<compile_context>
chip_gen: v7x
topology: tpu7x:2x2x1
jax: 0.10.0
libtpu: 0.0.40
codegen_flags: <defaults>
</compile_context>

<pallas_src>
import functools

import jax
import jax.numpy as jnp
from jax.experimental import pallas as pl
from jax.experimental.pallas import tpu as pltpu


def _round_up(x, m):
    return (x + m - 1) // m * m


def _cdiv(a, b):
    return (a + b - 1) // b


def _tree_reduce(fn, xs):
    xs = list(xs)
    while len(xs) > 1:
        nxt = [fn(xs[i], xs[i + 1]) for i in range(0, len(xs) - 1, 2)]
        if len(xs) % 2:
            nxt.append(xs[-1])
        xs = nxt
    return xs[0]


def _rssm_kernel(xa_ref, h_ref,
                 wih_ref, bih_ref, whh_ref, bhh_ref,
                 dw_ref, db_ref, ow_ref, ob_ref,
                 out_ref, *,
                 hidden_dim, hidden_pad, latent_dim, num_classes, layers,
                 out_width):
    H, Hp = hidden_dim, hidden_pad
    L, C = latent_dim, num_classes
    lc = L * C

    xa = xa_ref[...]                              # (TB, Kp)  bf16
    h_bf = h_ref[...]                             # (TB, H)   bf16
    h32 = h_bf.astype(jnp.float32)

    # ---- GRUCell, fused gates (PyTorch order r, z, n). Per-gate columns are
    # padded to Hp so the gate slices below are lane-tile-aligned views. -----
    gi = jnp.dot(xa, wih_ref[...],
                 preferred_element_type=jnp.float32) + bih_ref[...]   # (TB, 3Hp)
    gh = jnp.dot(h_bf, whh_ref[...],
                 preferred_element_type=jnp.float32) + bhh_ref[...]   # (TB, 3Hp)

    r = jax.nn.sigmoid(gi[:, 0:H] + gh[:, 0:H])
    z = jax.nn.sigmoid(gi[:, Hp:Hp + H] + gh[:, Hp:Hp + H])
    n = jnp.tanh(gi[:, 2 * Hp:2 * Hp + H] + r * gh[:, 2 * Hp:2 * Hp + H])
    h_new = (1.0 - z) * n + z * h32                # (TB, H) f32

    # ---- Dense MLP: `layers` x (Linear(H, H) + relu) ------------------------
    d = h_new
    for l in range(layers):                        # static unroll, small
        d = jnp.maximum(
            jnp.dot(d.astype(jnp.bfloat16), dw_ref[l],
                    preferred_element_type=jnp.float32) + db_ref[l],
            0.0)

    # ---- Output linear; columns are class-major (col = c*L + l) -------------
    lg = jnp.dot(d.astype(jnp.bfloat16), ow_ref[...],
                 preferred_element_type=jnp.float32) + ob_ref[...]    # (TB, C*L)

    # ---- Softmax over classes, no (TB, L, C) reshape: each class is a
    # contiguous (TB, L) lane slice; reduce with an unrolled elementwise tree.
    parts = [lg[:, c * L:(c + 1) * L] for c in range(C)]
    m = _tree_reduce(jnp.maximum, parts)                              # (TB, L)
    e = jnp.exp(lg - jnp.tile(m, (1, C)))                             # (TB, C*L)
    s = _tree_reduce(lambda u, v: u + v,
                     [e[:, c * L:(c + 1) * L] for c in range(C)])     # (TB, L)
    probs = e * jnp.tile(1.0 / s, (1, C))          # exact: rows sum to 1

    # ---- Single lane-dense fused output slab: [logits | probs | h' | pad] ---
    tb = lg.shape[0]
    pieces = [lg, probs, h_new]
    pad = out_width - (2 * lc + H)
    if pad:
        pieces.append(jnp.zeros((tb, pad), jnp.float32))
    out_ref[...] = jnp.concatenate(pieces, axis=-1)


def _chip_config():
    """(max batch tile, has two TensorCores, physical VMEM bytes)."""
    max_tb, two_tc, vmem_cap = 256, True, 64 * 2 ** 20
    try:
        kind = jax.devices()[0].device_kind.lower()
        is_v5e = ('v5 lite' in kind) or ('v5e' in kind) or ('v5litepod' in kind)
        is_v6 = 'v6' in kind
        max_tb = 128 if is_v5e else 256          # v5e MXU is 128-wide on M
        two_tc = not (is_v5e or is_v6)           # v4/v5p/v7x have 2 TCs/chip
    except Exception:
        pass
    try:
        vmem_cap = int(pltpu.get_tpu_info().vmem_capacity_bytes)
    except Exception:
        pass
    return max_tb, two_tc, vmem_cap


def rssm_transition_forward(x, a, h, params, *, latent_dim, num_classes,
                            action_dim, hidden_dim, layers):
    """Returns ((logits, p_x), h_new) matching the PyTorch module."""
    B = x.shape[0]
    L, C, H = latent_dim, num_classes, hidden_dim
    lc = L * C
    Hp = params["w_hh"].shape[1] // 3          # per-gate padded width
    Kp = params["w_ih"].shape[0]               # padded [x|a] width
    W = _round_up(2 * lc + H, 128)             # fused output slab width

    # [x | a] concatenated + padded once here; streamed bf16 (halves input HBM
    # traffic, MXU consumes bf16 anyway).  h also enters bf16; GRU elementwise
    # math is f32 in-kernel and h' is emitted in f32.
    xa = jnp.concatenate([x.reshape(B, lc), a.reshape(B, action_dim)], axis=-1)
    if Kp != lc + action_dim:
        xa = jnp.pad(xa, ((0, 0), (0, Kp - (lc + action_dim))))
    xa = xa.astype(jnp.bfloat16)
    h_bf = h.astype(jnp.bfloat16)

    # Batch tile selection: multiple of 16 (bf16 sublane packing), capped at
    # the MXU M width, >= 2 grid steps on two-TensorCore chips, minimal
    # padded rows.
    max_tb, two_tc, vmem_cap = _chip_config()
    min_steps = 2 if (two_tc and B > 16) else 1
    n_steps = max(min_steps, _cdiv(B, max_tb))
    tb = min(max_tb, _round_up(_cdiv(B, n_steps), 16))
    b_pad = tb * n_steps
    if b_pad != B:
        xa = jnp.pad(xa, ((0, b_pad - B), (0, 0)))
        h_bf = jnp.pad(h_bf, ((0, b_pad - B), (0, 0)))

    weights = (params["w_ih"], params["b_ih"], params["w_hh"], params["b_hh"],
               params["dense_w"], params["dense_b"],
               params["out_w"], params["out_b"])

    kernel = functools.partial(
        _rssm_kernel, hidden_dim=H, hidden_pad=Hp, latent_dim=L,
        num_classes=C, layers=layers, out_width=W)

    # VMEM budget: resident (single-buffered) weights + double-buffered
    # activation blocks, derived from chip capacity with headroom.
    wbytes = sum(int(w.size) * w.dtype.itemsize for w in weights)
    abytes = 2 * (tb * (Kp + H) * 2 + tb * W * 4)
    vmem_limit = int(min(0.75 * vmem_cap,
                         max(32 * 2 ** 20, 1.5 * (wbytes + abytes))))

    def call(single_buffer_weights):
        def w_spec(w):
            if single_buffer_weights:
                # Constant index_map -> weights stay resident across the grid;
                # single-buffer them so they do not cost 2x VMEM (matters most
                # on v7x's 64 MiB).
                return pl.BlockSpec(w.shape, lambda i, _n=w.ndim: (0,) * _n,
                                    pipeline_mode=pl.Buffered(buffer_count=1))
            return pl.BlockSpec(w.shape, lambda i, _n=w.ndim: (0,) * _n)

        in_specs = ([pl.BlockSpec((tb, Kp), lambda i: (i, 0)),
                     pl.BlockSpec((tb, H), lambda i: (i, 0))]
                    + [w_spec(w) for w in weights])
        out_specs = pl.BlockSpec((tb, W), lambda i: (i, 0))
        return pl.pallas_call(
            kernel,
            grid=(n_steps,),
            in_specs=in_specs,
            out_specs=out_specs,
            out_shape=jax.ShapeDtypeStruct((b_pad, W), jnp.float32),
            compiler_params=pltpu.CompilerParams(
                dimension_semantics=("parallel",),
                vmem_limit_bytes=vmem_limit),
        )(xa, h_bf, *weights)

    try:
        slab = call(True)
    except Exception:
        # pl.Buffered(1) not supported on this jax version -> default buffering.
        slab = call(False)

    logits_cm = slab[:B, 0:lc]
    probs_cm = slab[:B, lc:2 * lc]
    h_new = slab[:B, 2 * lc:2 * lc + H]
    # class-major -> (B, L, C): wrapper-side layout plumbing only.
    logits = logits_cm.reshape(B, C, L).transpose(0, 2, 1)
    p_x = probs_cm.reshape(B, C, L).transpose(0, 2, 1)
    return (logits, p_x), h_new


def init_params(key, *, latent_dim, num_classes, action_dim, hidden_dim, layers):
    """Canonical f32 parameters, PyTorch-default-style uniform init.

    Matmul weights are stored pre-transposed (in_features, out_features); the
    GRU gate order along the 3H axis is (r, z, n); out_w column order is the
    standard l*C + c.  Use `pack_params` to produce the kernel layout.
    """
    lc = latent_dim * num_classes
    in_size = lc + action_dim
    ks = jax.random.split(key, 8)
    s = 1.0 / jnp.sqrt(hidden_dim)
    u = lambda k, shape: jax.random.uniform(k, shape, jnp.float32, -s, s)
    return {
        "w_ih": u(ks[0], (in_size, 3 * hidden_dim)),
        "b_ih": u(ks[1], (3 * hidden_dim,)),
        "w_hh": u(ks[2], (hidden_dim, 3 * hidden_dim)),
        "b_hh": u(ks[3], (3 * hidden_dim,)),
        "dense_w": u(ks[4], (layers, hidden_dim, hidden_dim)),
        "dense_b": u(ks[5], (layers, hidden_dim)),
        "out_w": u(ks[6], (hidden_dim, lc)),
        "out_b": u(ks[7], (lc,)),
    }


def pack_params(p, *, latent_dim, num_classes, action_dim, hidden_dim):
    """Re-layout canonical f32 params for the kernel.

    * matmul weights -> bf16 (native MXU input dtype); biases stay f32
    * per-gate GRU columns padded to Hp = round_up(H, 128) (aligned slices)
    * x-path and a-path input weights fused into one (Kp, 3*Hp) operand
    * out_w/out_b columns permuted class-major (col = c*L + l)
    """
    L, C, A, H = latent_dim, num_classes, action_dim, hidden_dim
    lc = L * C
    Hp = _round_up(H, 128)
    K = lc + A
    Kp = _round_up(K, 16)
    bf = lambda w: w.astype(jnp.bfloat16)

    def pad_gates(w2d):                           # (rows, 3H) -> (rows, 3Hp)
        out = jnp.zeros((w2d.shape[0], 3 * Hp), w2d.dtype)
        for g in range(3):
            out = out.at[:, g * Hp:g * Hp + H].set(w2d[:, g * H:(g + 1) * H])
        return out

    w_ih = jnp.pad(pad_gates(p["w_ih"]), ((0, Kp - K), (0, 0)))
    w_hh = pad_gates(p["w_hh"])
    b_ih = pad_gates(p["b_ih"][None, :])
    b_hh = pad_gates(p["b_hh"][None, :])
    out_w = p["out_w"].reshape(H, L, C).transpose(0, 2, 1).reshape(H, lc)
    out_b = p["out_b"].reshape(L, C).T.reshape(1, lc)
    return {
        "w_ih": bf(w_ih), "b_ih": b_ih,
        "w_hh": bf(w_hh), "b_hh": b_hh,
        "dense_w": bf(p["dense_w"]), "dense_b": p["dense_b"][:, None, :],
        "out_w": bf(out_w), "out_b": out_b,
    }


def _reference_forward(x, a, h, params, *, latent_dim, num_classes,
                       action_dim, hidden_dim, layers):
    """Pure-JAX f32 reference (canonical params) for the correctness check."""
    b = x.shape[0]
    H = hidden_dim
    xa = jnp.concatenate([x.reshape(b, latent_dim * num_classes),
                          a.reshape(b, action_dim)], axis=-1)
    gi = xa @ params["w_ih"] + params["b_ih"]
    gh = h @ params["w_hh"] + params["b_hh"]
    r = jax.nn.sigmoid(gi[:, :H] + gh[:, :H])
    z = jax.nn.sigmoid(gi[:, H:2 * H] + gh[:, H:2 * H])
    n = jnp.tanh(gi[:, 2 * H:] + r * gh[:, 2 * H:])
    h_new = (1.0 - z) * n + z * h
    d = h_new
    for l in range(layers):
        d = jax.nn.relu(d @ params["dense_w"][l] + params["dense_b"][l])
    logits = (d @ params["out_w"] + params["out_b"]).reshape(
        b, latent_dim, num_classes)
    return logits, jax.nn.softmax(logits, axis=-1), h_new


if __name__ == "__main__":
    BATCH = 2
    LATENT_DIM = 8
    NUM_CLASSES = 4
    ACTION_DIM = 4
    HIDDEN_DIM = 32
    LAYERS = 2

    key = jax.random.PRNGKey(0)
    kx, ka, kh, kp = jax.random.split(key, 4)
    x = jax.random.normal(kx, (BATCH, LATENT_DIM, NUM_CLASSES), jnp.float32)
    a = jax.random.normal(ka, (BATCH, ACTION_DIM), jnp.float32)
    h = jax.random.normal(kh, (BATCH, HIDDEN_DIM), jnp.float32)

    params = init_params(kp, latent_dim=LATENT_DIM, num_classes=NUM_CLASSES,
                         action_dim=ACTION_DIM, hidden_dim=HIDDEN_DIM,
                         layers=LAYERS)
    kparams = pack_params(params, latent_dim=LATENT_DIM,
                          num_classes=NUM_CLASSES, action_dim=ACTION_DIM,
                          hidden_dim=HIDDEN_DIM)

    (logits, p_x), h_new = rssm_transition_forward(
        x, a, h, kparams,
        latent_dim=LATENT_DIM, num_classes=NUM_CLASSES,
        action_dim=ACTION_DIM, hidden_dim=HIDDEN_DIM, layers=LAYERS)
    jax.block_until_ready((logits, p_x, h_new))

    ref_logits, ref_p, ref_h = _reference_forward(
        x, a, h, params,
        latent_dim=LATENT_DIM, num_classes=NUM_CLASSES,
        action_dim=ACTION_DIM, hidden_dim=HIDDEN_DIM, layers=LAYERS)

    assert logits.shape == (BATCH, LATENT_DIM, NUM_CLASSES)
    assert p_x.shape == (BATCH, LATENT_DIM, NUM_CLASSES)
    assert h_new.shape == (BATCH, HIDDEN_DIM)
    # bf16 matmul weights / bf16 activation inputs -> loosened tolerance.
    assert jnp.allclose(logits, ref_logits, atol=3e-2, rtol=3e-2)
    assert jnp.allclose(p_x, ref_p, atol=3e-2, rtol=3e-2)
    assert jnp.allclose(h_new, ref_h, atol=3e-2, rtol=3e-2)
    # probs rows must sum to 1 (exact reciprocal in the kernel).
    assert jnp.allclose(p_x.sum(-1), jnp.ones((BATCH, LATENT_DIM)), atol=1e-3)

    print("KERNEL_OK")
</pallas_src>

<mosaic_0001>
module attributes {stable_mosaic.version = 11 : i64} {
  func.func @_rssm_kernel(%arg0: i32, %arg1: memref<16x48xbf16, #tpu.memory_space<vmem>>, %arg2: memref<16x32xbf16, #tpu.memory_space<vmem>>, %arg3: memref<48x384xbf16, #tpu.memory_space<vmem>>, %arg4: memref<1x384xf32, #tpu.memory_space<vmem>>, %arg5: memref<32x384xbf16, #tpu.memory_space<vmem>>, %arg6: memref<1x384xf32, #tpu.memory_space<vmem>>, %arg7: memref<2x32x32xbf16, #tpu.memory_space<vmem>>, %arg8: memref<2x1x32xf32, #tpu.memory_space<vmem>>, %arg9: memref<32x32xbf16, #tpu.memory_space<vmem>>, %arg10: memref<1x32xf32, #tpu.memory_space<vmem>>, %arg11: memref<16x128xf32, #tpu.memory_space<vmem>>) attributes {dimension_semantics = [#tpu.dimension_semantics<parallel>], iteration_bounds = array<i64: 1>, scalar_prefetch = 0 : i64, scratch_operands = 0 : i64, tpu.core_type = #tpu.core_type<tc>, window_params = [{transform_indices = @transform_0, window_bounds = array<i64: 16, 48>}, {transform_indices = @transform_1, window_bounds = array<i64: 16, 32>}, {pipeline_mode = #tpu.pipeline_mode<synchronous>, transform_indices = @transform_2, window_bounds = array<i64: 48, 384>}, {pipeline_mode = #tpu.pipeline_mode<synchronous>, transform_indices = @transform_3, window_bounds = array<i64: 1, 384>}, {pipeline_mode = #tpu.pipeline_mode<synchronous>, transform_indices = @transform_4, window_bounds = array<i64: 32, 384>}, {pipeline_mode = #tpu.pipeline_mode<synchronous>, transform_indices = @transform_5, window_bounds = array<i64: 1, 384>}, {pipeline_mode = #tpu.pipeline_mode<synchronous>, transform_indices = @transform_6, window_bounds = array<i64: 2, 32, 32>}, {pipeline_mode = #tpu.pipeline_mode<synchronous>, transform_indices = @transform_7, window_bounds = array<i64: 2, 1, 32>}, {pipeline_mode = #tpu.pipeline_mode<synchronous>, transform_indices = @transform_8, window_bounds = array<i64: 32, 32>}, {pipeline_mode = #tpu.pipeline_mode<synchronous>, transform_indices = @transform_9, window_bounds = array<i64: 1, 32>}, {transform_indices = @transform_10, window_bounds = array<i64: 16, 128>}]} {
    %c0 = arith.constant 0 : index
    %c0_0 = arith.constant 0 : index
    %0 = vector.load %arg1[%c0, %c0_0] : memref<16x48xbf16, #tpu.memory_space<vmem>>, vector<16x48xbf16>
    %c0_1 = arith.constant 0 : index
    %c0_2 = arith.constant 0 : index
    %1 = vector.load %arg2[%c0_1, %c0_2] : memref<16x32xbf16, #tpu.memory_space<vmem>>, vector<16x32xbf16>
    %2 = arith.extf %1 : vector<16x32xbf16> to vector<16x32xf32>
    %c0_3 = arith.constant 0 : index
    %c0_4 = arith.constant 0 : index
    %3 = vector.load %arg3[%c0_3, %c0_4] : memref<48x384xbf16, #tpu.memory_space<vmem>>, vector<48x384xbf16>
    %cst = arith.constant dense<0.000000e+00> : vector<16x384xf32>
    %4 = tpu.matmul %0, %3, %cst {dimension_numbers = #tpu.dot_dimension_numbers<[1], [0], [0], [1], [0, 0, 1, 1], [], []>} : vector<16x48xbf16>, vector<48x384xbf16>, vector<16x384xf32> -> vector<16x384xf32>
    %c0_5 = arith.constant 0 : index
    %c0_6 = arith.constant 0 : index
    %5 = vector.load %arg4[%c0_5, %c0_6] : memref<1x384xf32, #tpu.memory_space<vmem>>, vector<1x384xf32>
    %6 = vector.broadcast %5 : vector<1x384xf32> to vector<16x384xf32>
    %7 = arith.addf %4, %6 : vector<16x384xf32>
    %c0_7 = arith.constant 0 : index
    %c0_8 = arith.constant 0 : index
    %8 = vector.load %arg5[%c0_7, %c0_8] : memref<32x384xbf16, #tpu.memory_space<vmem>>, vector<32x384xbf16>
    %cst_9 = arith.constant dense<0.000000e+00> : vector<16x384xf32>
    %9 = tpu.matmul %1, %8, %cst_9 {dimension_numbers = #tpu.dot_dimension_numbers<[1], [0], [0], [1], [0, 0, 1, 1], [], []>} : vector<16x32xbf16>, vector<32x384xbf16>, vector<16x384xf32> -> vector<16x384xf32>
    %c0_10 = arith.constant 0 : index
    %c0_11 = arith.constant 0 : index
    %10 = vector.load %arg6[%c0_10, %c0_11] : memref<1x384xf32, #tpu.memory_space<vmem>>, vector<1x384xf32>
    %11 = vector.broadcast %10 : vector<1x384xf32> to vector<16x384xf32>
    %12 = arith.addf %9, %11 : vector<16x384xf32>
    %13 = vector.extract_strided_slice %7 {offsets = [0, 0], sizes = [16, 32], strides = [1, 1]} : vector<16x384xf32> to vector<16x32xf32>
    %14 = vector.extract_strided_slice %12 {offsets = [0, 0], sizes = [16, 32], strides = [1, 1]} : vector<16x384xf32> to vector<16x32xf32>
    %15 = arith.addf %13, %14 : vector<16x32xf32>
    %16 = arith.negf %15 : vector<16x32xf32>
    %17 = math.exp %16 : vector<16x32xf32>
    %cst_12 = arith.constant 1.000000e+00 : f32
    %18 = vector.broadcast %cst_12 : f32 to vector<16x32xf32>
    %19 = arith.addf %18, %17 : vector<16x32xf32>
    %20 = arith.divf %18, %19 : vector<16x32xf32>
    %21 = vector.extract_strided_slice %7 {offsets = [0, 128], sizes = [16, 32], strides = [1, 1]} : vector<16x384xf32> to vector<16x32xf32>
    %22 = vector.extract_strided_slice %12 {offsets = [0, 128], sizes = [16, 32], strides = [1, 1]} : vector<16x384xf32> to vector<16x32xf32>
    %23 = arith.addf %21, %22 : vector<16x32xf32>
    %24 = arith.negf %23 : vector<16x32xf32>
    %25 = math.exp %24 : vector<16x32xf32>
    %cst_13 = arith.constant 1.000000e+00 : f32
    %26 = vector.broadcast %cst_13 : f32 to vector<16x32xf32>
    %27 = arith.addf %26, %25 : vector<16x32xf32>
    %28 = arith.divf %26, %27 : vector<16x32xf32>
    %29 = vector.extract_strided_slice %7 {offsets = [0, 256], sizes = [16, 32], strides = [1, 1]} : vector<16x384xf32> to vector<16x32xf32>
    %30 = vector.extract_strided_slice %12 {offsets = [0, 256], sizes = [16, 32], strides = [1, 1]} : vector<16x384xf32> to vector<16x32xf32>
    %31 = arith.mulf %20, %30 : vector<16x32xf32>
    %32 = arith.addf %29, %31 : vector<16x32xf32>
    %33 = math.tanh %32 : vector<16x32xf32>
    %cst_14 = arith.constant 1.000000e+00 : f32
    %34 = vector.broadcast %cst_14 : f32 to vector<16x32xf32>
    %35 = arith.subf %34, %28 : vector<16x32xf32>
    %36 = arith.mulf %35, %33 : vector<16x32xf32>
    %37 = arith.mulf %28, %2 : vector<16x32xf32>
    %38 = arith.addf %36, %37 : vector<16x32xf32>
    %39 = arith.truncf %38 : vector<16x32xf32> to vector<16x32xbf16>
    %c0_15 = arith.constant 0 : index
    %c0_16 = arith.constant 0 : index
    %c0_17 = arith.constant 0 : index
    %40 = vector.load %arg7[%c0_15, %c0_16, %c0_17] : memref<2x32x32xbf16, #tpu.memory_space<vmem>>, vector<1x32x32xbf16>
    %41 = vector.shape_cast %40 : vector<1x32x32xbf16> to vector<32x32xbf16>
    %cst_18 = arith.constant dense<0.000000e+00> : vector<16x32xf32>
    %42 = tpu.matmul %39, %41, %cst_18 {dimension_numbers = #tpu.dot_dimension_numbers<[1], [0], [0], [1], [0, 0, 1, 1], [], []>} : vector<16x32xbf16>, vector<32x32xbf16>, vector<16x32xf32> -> vector<16x32xf32>
    %c0_19 = arith.constant 0 : index
    %c0_20 = arith.constant 0 : index
    %c0_21 = arith.constant 0 : index
    %43 = vector.load %arg8[%c0_19, %c0_20, %c0_21] : memref<2x1x32xf32, #tpu.memory_space<vmem>>, vector<1x1x32xf32>
    %44 = vector.shape_cast %43 : vector<1x1x32xf32> to vector<1x32xf32>
    %45 = vector.broadcast %44 : vector<1x32xf32> to vector<16x32xf32>
    %46 = arith.addf %42, %45 : vector<16x32xf32>
    %cst_22 = arith.constant 0.000000e+00 : f32
    %47 = vector.broadcast %cst_22 : f32 to vector<16x32xf32>
    %48 = arith.maximumf %46, %47 : vector<16x32xf32>
    %49 = arith.truncf %48 : vector<16x32xf32> to vector<16x32xbf16>
    %c1 = arith.constant 1 : index
    %c0_23 = arith.constant 0 : index
    %c0_24 = arith.constant 0 : index
    %50 = vector.load %arg7[%c1, %c0_23, %c0_24] : memref<2x32x32xbf16, #tpu.memory_space<vmem>>, vector<1x32x32xbf16>
    %51 = vector.shape_cast %50 : vector<1x32x32xbf16> to vector<32x32xbf16>
    %cst_25 = arith.constant dense<0.000000e+00> : vector<16x32xf32>
    %52 = tpu.matmul %49, %51, %cst_25 {dimension_numbers = #tpu.dot_dimension_numbers<[1], [0], [0], [1], [0, 0, 1, 1], [], []>} : vector<16x32xbf16>, vector<32x32xbf16>, vector<16x32xf32> -> vector<16x32xf32>
    %c1_26 = arith.constant 1 : index
    %c0_27 = arith.constant 0 : index
    %c0_28 = arith.constant 0 : index
    %53 = vector.load %arg8[%c1_26, %c0_27, %c0_28] : memref<2x1x32xf32, #tpu.memory_space<vmem>>, vector<1x1x32xf32>
    %54 = vector.shape_cast %53 : vector<1x1x32xf32> to vector<1x32xf32>
    %55 = vector.broadcast %54 : vector<1x32xf32> to vector<16x32xf32>
    %56 = arith.addf %52, %55 : vector<16x32xf32>
    %cst_29 = arith.constant 0.000000e+00 : f32
    %57 = vector.broadcast %cst_29 : f32 to vector<16x32xf32>
    %58 = arith.maximumf %56, %57 : vector<16x32xf32>
    %59 = arith.truncf %58 : vector<16x32xf32> to vector<16x32xbf16>
    %c0_30 = arith.constant 0 : index
    %c0_31 = arith.constant 0 : index
    %60 = vector.load %arg9[%c0_30, %c0_31] : memref<32x32xbf16, #tpu.memory_space<vmem>>, vector<32x32xbf16>
    %cst_32 = arith.constant dense<0.000000e+00> : vector<16x32xf32>
    %61 = tpu.matmul %59, %60, %cst_32 {dimension_numbers = #tpu.dot_dimension_numbers<[1], [0], [0], [1], [0, 0, 1, 1], [], []>} : vector<16x32xbf16>, vector<32x32xbf16>, vector<16x32xf32> -> vector<16x32xf32>
    %c0_33 = arith.constant 0 : index
    %c0_34 = arith.constant 0 : index
    %62 = vector.load %arg10[%c0_33, %c0_34] : memref<1x32xf32, #tpu.memory_space<vmem>>, vector<1x32xf32>
    %63 = vector.broadcast %62 : vector<1x32xf32> to vector<16x32xf32>
    %64 = arith.addf %61, %63 : vector<16x32xf32>
    %65 = vector.extract_strided_slice %64 {offsets = [0, 0], sizes = [16, 8], strides = [1, 1]} : vector<16x32xf32> to vector<16x8xf32>
    %66 = vector.extract_strided_slice %64 {offsets = [0, 8], sizes = [16, 8], strides = [1, 1]} : vector<16x32xf32> to vector<16x8xf32>
    %67 = vector.extract_strided_slice %64 {offsets = [0, 16], sizes = [16, 8], strides = [1, 1]} : vector<16x32xf32> to vector<16x8xf32>
    %68 = vector.extract_strided_slice %64 {offsets = [0, 24], sizes = [16, 8], strides = [1, 1]} : vector<16x32xf32> to vector<16x8xf32>
    %69 = arith.maximumf %65, %66 : vector<16x8xf32>
    %70 = arith.maximumf %67, %68 : vector<16x8xf32>
    %71 = arith.maximumf %69, %70 : vector<16x8xf32>
    %72 = tpu.concatenate %71, %71, %71, %71 in 1 : vector<16x8xf32>, vector<16x8xf32>, vector<16x8xf32>, vector<16x8xf32> -> vector<16x32xf32>
    %73 = arith.subf %64, %72 : vector<16x32xf32>
    %74 = math.exp %73 : vector<16x32xf32>
    %75 = vector.extract_strided_slice %74 {offsets = [0, 0], sizes = [16, 8], strides = [1, 1]} : vector<16x32xf32> to vector<16x8xf32>
    %76 = vector.extract_strided_slice %74 {offsets = [0, 8], sizes = [16, 8], strides = [1, 1]} : vector<16x32xf32> to vector<16x8xf32>
    %77 = vector.extract_strided_slice %74 {offsets = [0, 16], sizes = [16, 8], strides = [1, 1]} : vector<16x32xf32> to vector<16x8xf32>
    %78 = vector.extract_strided_slice %74 {offsets = [0, 24], sizes = [16, 8], strides = [1, 1]} : vector<16x32xf32> to vector<16x8xf32>
    %79 = arith.addf %75, %76 : vector<16x8xf32>
    %80 = arith.addf %77, %78 : vector<16x8xf32>
    %81 = arith.addf %79, %80 : vector<16x8xf32>
    %cst_35 = arith.constant 1.000000e+00 : f32
    %82 = vector.broadcast %cst_35 : f32 to vector<16x8xf32>
    %83 = arith.divf %82, %81 : vector<16x8xf32>
    %84 = tpu.concatenate %83, %83, %83, %83 in 1 : vector<16x8xf32>, vector<16x8xf32>, vector<16x8xf32>, vector<16x8xf32> -> vector<16x32xf32>
    %85 = arith.mulf %74, %84 : vector<16x32xf32>
    %cst_36 = arith.constant 0.000000e+00 : f32
    %86 = vector.broadcast %cst_36 : f32 to vector<16x32xf32>
    %87 = tpu.concatenate %64, %85, %38, %86 in 1 : vector<16x32xf32>, vector<16x32xf32>, vector<16x32xf32>, vector<16x32xf32> -> vector<16x128xf32>
    %c0_37 = arith.constant 0 : index
    %c0_38 = arith.constant 0 : index
    %88 = vector.load %arg11[%c0_37, %c0_38] : memref<16x128xf32, #tpu.memory_space<vmem>>, vector<16x128xf32>
    tpu.vector_store %arg11[%c0_37, %c0_38], %87 {strides = array<i32>} : memref<16x128xf32, #tpu.memory_space<vmem>>, vector<16x128xf32>,
    return
  }
  func.func @transform_0(%arg0: i32) -> (i32, i32) {
    %c0_i32 = arith.constant 0 : i32
    %c0_i32_0 = arith.constant 0 : i32
    return %arg0, %c0_i32 : i32, i32
  }
  func.func @transform_1(%arg0: i32) -> (i32, i32) {
    %c0_i32 = arith.constant 0 : i32
    %c0_i32_0 = arith.constant 0 : i32
    return %arg0, %c0_i32 : i32, i32
  }
  func.func @transform_2(%arg0: i32) -> (i32, i32) {
    %c0_i32 = arith.constant 0 : i32
    %c0_i32_0 = arith.constant 0 : i32
    %c0_i32_1 = arith.constant 0 : i32
    return %c0_i32, %c0_i32_0 : i32, i32
  }
  func.func @transform_3(%arg0: i32) -> (i32, i32) {
    %c0_i32 = arith.constant 0 : i32
    %c0_i32_0 = arith.constant 0 : i32
    %c0_i32_1 = arith.constant 0 : i32
    return %c0_i32, %c0_i32_0 : i32, i32
  }
  func.func @transform_4(%arg0: i32) -> (i32, i32) {
    %c0_i32 = arith.constant 0 : i32
    %c0_i32_0 = arith.constant 0 : i32
    %c0_i32_1 = arith.constant 0 : i32
    return %c0_i32, %c0_i32_0 : i32, i32
  }
  func.func @transform_5(%arg0: i32) -> (i32, i32) {
    %c0_i32 = arith.constant 0 : i32
    %c0_i32_0 = arith.constant 0 : i32
    %c0_i32_1 = arith.constant 0 : i32
    return %c0_i32, %c0_i32_0 : i32, i32
  }
  func.func @transform_6(%arg0: i32) -> (i32, i32, i32) {
    %c0_i32 = arith.constant 0 : i32
    %c0_i32_0 = arith.constant 0 : i32
    %c0_i32_1 = arith.constant 0 : i32
    %c0_i32_2 = arith.constant 0 : i32
    return %c0_i32, %c0_i32_0, %c0_i32_1 : i32, i32, i32
  }
  func.func @transform_7(%arg0: i32) -> (i32, i32, i32) {
    %c0_i32 = arith.constant 0 : i32
    %c0_i32_0 = arith.constant 0 : i32
    %c0_i32_1 = arith.constant 0 : i32
    %c0_i32_2 = arith.constant 0 : i32
    return %c0_i32, %c0_i32_0, %c0_i32_1 : i32, i32, i32
  }
  func.func @transform_8(%arg0: i32) -> (i32, i32) {
    %c0_i32 = arith.constant 0 : i32
    %c0_i32_0 = arith.constant 0 : i32
    %c0_i32_1 = arith.constant 0 : i32
    return %c0_i32, %c0_i32_0 : i32, i32
  }
  func.func @transform_9(%arg0: i32) -> (i32, i32) {
    %c0_i32 = arith.constant 0 : i32
    %c0_i32_0 = arith.constant 0 : i32
    %c0_i32_1 = arith.constant 0 : i32
    return %c0_i32, %c0_i32_0 : i32, i32
  }
  func.func @transform_10(%arg0: i32) -> (i32, i32) {
    %c0_i32 = arith.constant 0 : i32
    %c0_i32_0 = arith.constant 0 : i32
    return %arg0, %c0_i32 : i32, i32
  }
}

module attributes {stable_mosaic.version = 11 : i64} {
  func.func @_rssm_kernel(%arg0: i32, %arg1: memref<16x48xbf16, #tpu.memory_space<vmem>>, %arg2: memref<16x32xbf16, #tpu.memory_space<vmem>>, %arg3: memref<48x384xbf16, #tpu.memory_space<vmem>>, %arg4: memref<1x384xf32, #tpu.memory_space<vmem>>, %arg5: memref<32x384xbf16, #tpu.memory_space<vmem>>, %arg6: memref<1x384xf32, #tpu.memory_space<vmem>>, %arg7: memref<2x32x32xbf16, #tpu.memory_space<vmem>>, %arg8: memref<2x1x32xf32, #tpu.memory_space<vmem>>, %arg9: memref<32x32xbf16, #tpu.memory_space<vmem>>, %arg10: memref<1x32xf32, #tpu.memory_space<vmem>>, %arg11: memref<16x128xf32, #tpu.memory_space<vmem>>) attributes {dimension_semantics = [#tpu.dimension_semantics<parallel>], iteration_bounds = array<i64: 1>, scalar_prefetch = 0 : i64, scratch_operands = 0 : i64, tpu.core_type = #tpu.core_type<tc>, window_params = [{transform_indices = @transform_0, window_bounds = array<i64: 16, 48>}, {transform_indices = @transform_1, window_bounds = array<i64: 16, 32>}, {pipeline_mode = #tpu.pipeline_mode<synchronous>, transform_indices = @transform_2, window_bounds = array<i64: 48, 384>}, {pipeline_mode = #tpu.pipeline_mode<synchronous>, transform_indices = @transform_3, window_bounds = array<i64: 1, 384>}, {pipeline_mode = #tpu.pipeline_mode<synchronous>, transform_indices = @transform_4, window_bounds = array<i64: 32, 384>}, {pipeline_mode = #tpu.pipeline_mode<synchronous>, transform_indices = @transform_5, window_bounds = array<i64: 1, 384>}, {pipeline_mode = #tpu.pipeline_mode<synchronous>, transform_indices = @transform_6, window_bounds = array<i64: 2, 32, 32>}, {pipeline_mode = #tpu.pipeline_mode<synchronous>, transform_indices = @transform_7, window_bounds = array<i64: 2, 1, 32>}, {pipeline_mode = #tpu.pipeline_mode<synchronous>, transform_indices = @transform_8, window_bounds = array<i64: 32, 32>}, {pipeline_mode = #tpu.pipeline_mode<synchronous>, transform_indices = @transform_9, window_bounds = array<i64: 1, 32>}, {transform_indices = @transform_10, window_bounds = array<i64: 16, 128>}]} {
    %c0 = arith.constant 0 : index
    %c0_0 = arith.constant 0 : index
    %0 = vector.load %arg1[%c0, %c0_0] : memref<16x48xbf16, #tpu.memory_space<vmem>>, vector<16x48xbf16>
    %c0_1 = arith.constant 0 : index
    %c0_2 = arith.constant 0 : index
    %1 = vector.load %arg2[%c0_1, %c0_2] : memref<16x32xbf16, #tpu.memory_space<vmem>>, vector<16x32xbf16>
    %2 = arith.extf %1 : vector<16x32xbf16> to vector<16x32xf32>
    %c0_3 = arith.constant 0 : index
    %c0_4 = arith.constant 0 : index
    %3 = vector.load %arg3[%c0_3, %c0_4] : memref<48x384xbf16, #tpu.memory_space<vmem>>, vector<48x384xbf16>
    %cst = arith.constant dense<0.000000e+00> : vector<16x384xf32>
    %4 = tpu.matmul %0, %3, %cst {dimension_numbers = #tpu.dot_dimension_numbers<[1], [0], [0], [1], [0, 0, 1, 1], [], []>} : vector<16x48xbf16>, vector<48x384xbf16>, vector<16x384xf32> -> vector<16x384xf32>
    %c0_5 = arith.constant 0 : index
    %c0_6 = arith.constant 0 : index
    %5 = vector.load %arg4[%c0_5, %c0_6] : memref<1x384xf32, #tpu.memory_space<vmem>>, vector<1x384xf32>
    %6 = vector.broadcast %5 : vector<1x384xf32> to vector<16x384xf32>
    %7 = arith.addf %4, %6 : vector<16x384xf32>
    %c0_7 = arith.constant 0 : index
    %c0_8 = arith.constant 0 : index
    %8 = vector.load %arg5[%c0_7, %c0_8] : memref<32x384xbf16, #tpu.memory_space<vmem>>, vector<32x384xbf16>
    %cst_9 = arith.constant dense<0.000000e+00> : vector<16x384xf32>
    %9 = tpu.matmul %1, %8, %cst_9 {dimension_numbers = #tpu.dot_dimension_numbers<[1], [0], [0], [1], [0, 0, 1, 1], [], []>} : vector<16x32xbf16>, vector<32x384xbf16>, vector<16x384xf32> -> vector<16x384xf32>
    %c0_10 = arith.constant 0 : index
    %c0_11 = arith.constant 0 : index
    %10 = vector.load %arg6[%c0_10, %c0_11] : memref<1x384xf32, #tpu.memory_space<vmem>>, vector<1x384xf32>
    %11 = vector.broadcast %10 : vector<1x384xf32> to vector<16x384xf32>
    %12 = arith.addf %9, %11 : vector<16x384xf32>
    %13 = vector.extract_strided_slice %7 {offsets = [0, 0], sizes = [16, 32], strides = [1, 1]} : vector<16x384xf32> to vector<16x32xf32>
    %14 = vector.extract_strided_slice %12 {offsets = [0, 0], sizes = [16, 32], strides = [1, 1]} : vector<16x384xf32> to vector<16x32xf32>
    %15 = arith.addf %13, %14 : vector<16x32xf32>
    %16 = arith.negf %15 : vector<16x32xf32>
    %17 = math.exp %16 : vector<16x32xf32>
    %cst_12 = arith.constant 1.000000e+00 : f32
    %18 = vector.broadcast %cst_12 : f32 to vector<16x32xf32>
    %19 = arith.addf %18, %17 : vector<16x32xf32>
    %20 = arith.divf %18, %19 : vector<16x32xf32>
    %21 = vector.extract_strided_slice %7 {offsets = [0, 128], sizes = [16, 32], strides = [1, 1]} : vector<16x384xf32> to vector<16x32xf32>
    %22 = vector.extract_strided_slice %12 {offsets = [0, 128], sizes = [16, 32], strides = [1, 1]} : vector<16x384xf32> to vector<16x32xf32>
    %23 = arith.addf %21, %22 : vector<16x32xf32>
    %24 = arith.negf %23 : vector<16x32xf32>
    %25 = math.exp %24 : vector<16x32xf32>
    %cst_13 = arith.constant 1.000000e+00 : f32
    %26 = vector.broadcast %cst_13 : f32 to vector<16x32xf32>
    %27 = arith.addf %26, %25 : vector<16x32xf32>
    %28 = arith.divf %26, %27 : vector<16x32xf32>
    %29 = vector.extract_strided_slice %7 {offsets = [0, 256], sizes = [16, 32], strides = [1, 1]} : vector<16x384xf32> to vector<16x32xf32>
    %30 = vector.extract_strided_slice %12 {offsets = [0, 256], sizes = [16, 32], strides = [1, 1]} : vector<16x384xf32> to vector<16x32xf32>
    %31 = arith.mulf %20, %30 : vector<16x32xf32>
    %32 = arith.addf %29, %31 : vector<16x32xf32>
    %33 = math.tanh %32 : vector<16x32xf32>
    %cst_14 = arith.constant 1.000000e+00 : f32
    %34 = vector.broadcast %cst_14 : f32 to vector<16x32xf32>
    %35 = arith.subf %34, %28 : vector<16x32xf32>
    %36 = arith.mulf %35, %33 : vector<16x32xf32>
    %37 = arith.mulf %28, %2 : vector<16x32xf32>
    %38 = arith.addf %36, %37 : vector<16x32xf32>
    %39 = arith.truncf %38 : vector<16x32xf32> to vector<16x32xbf16>
    %c0_15 = arith.constant 0 : index
    %c0_16 = arith.constant 0 : index
    %c0_17 = arith.constant 0 : index
    %40 = vector.load %arg7[%c0_15, %c0_16, %c0_17] : memref<2x32x32xbf16, #tpu.memory_space<vmem>>, vector<1x32x32xbf16>
    %41 = vector.shape_cast %40 : vector<1x32x32xbf16> to vector<32x32xbf16>
    %cst_18 = arith.constant dense<0.000000e+00> : vector<16x32xf32>
    %42 = tpu.matmul %39, %41, %cst_18 {dimension_numbers = #tpu.dot_dimension_numbers<[1], [0], [0], [1], [0, 0, 1, 1], [], []>} : vector<16x32xbf16>, vector<32x32xbf16>, vector<16x32xf32> -> vector<16x32xf32>
    %c0_19 = arith.constant 0 : index
    %c0_20 = arith.constant 0 : index
    %c0_21 = arith.constant 0 : index
    %43 = vector.load %arg8[%c0_19, %c0_20, %c0_21] : memref<2x1x32xf32, #tpu.memory_space<vmem>>, vector<1x1x32xf32>
    %44 = vector.shape_cast %43 : vector<1x1x32xf32> to vector<1x32xf32>
    %45 = vector.broadcast %44 : vector<1x32xf32> to vector<16x32xf32>
    %46 = arith.addf %42, %45 : vector<16x32xf32>
    %cst_22 = arith.constant 0.000000e+00 : f32
    %47 = vector.broadcast %cst_22 : f32 to vector<16x32xf32>
    %48 = arith.maximumf %46, %47 : vector<16x32xf32>
    %49 = arith.truncf %48 : vector<16x32xf32> to vector<16x32xbf16>
    %c1 = arith.constant 1 : index
    %c0_23 = arith.constant 0 : index
    %c0_24 = arith.constant 0 : index
    %50 = vector.load %arg7[%c1, %c0_23, %c0_24] : memref<2x32x32xbf16, #tpu.memory_space<vmem>>, vector<1x32x32xbf16>
    %51 = vector.shape_cast %50 : vector<1x32x32xbf16> to vector<32x32xbf16>
    %cst_25 = arith.constant dense<0.000000e+00> : vector<16x32xf32>
    %52 = tpu.matmul %49, %51, %cst_25 {dimension_numbers = #tpu.dot_dimension_numbers<[1], [0], [0], [1], [0, 0, 1, 1], [], []>} : vector<16x32xbf16>, vector<32x32xbf16>, vector<16x32xf32> -> vector<16x32xf32>
    %c1_26 = arith.constant 1 : index
    %c0_27 = arith.constant 0 : index
    %c0_28 = arith.constant 0 : index
    %53 = vector.load %arg8[%c1_26, %c0_27, %c0_28] : memref<2x1x32xf32, #tpu.memory_space<vmem>>, vector<1x1x32xf32>
    %54 = vector.shape_cast %53 : vector<1x1x32xf32> to vector<1x32xf32>
    %55 = vector.broadcast %54 : vector<1x32xf32> to vector<16x32xf32>
    %56 = arith.addf %52, %55 : vector<16x32xf32>
    %cst_29 = arith.constant 0.000000e+00 : f32
    %57 = vector.broadcast %cst_29 : f32 to vector<16x32xf32>
    %58 = arith.maximumf %56, %57 : vector<16x32xf32>
    %59 = arith.truncf %58 : vector<16x32xf32> to vector<16x32xbf16>
    %c0_30 = arith.constant 0 : index
    %c0_31 = arith.constant 0 : index
    %60 = vector.load %arg9[%c0_30, %c0_31] : memref<32x32xbf16, #tpu.memory_space<vmem>>, vector<32x32xbf16>
    %cst_32 = arith.constant dense<0.000000e+00> : vector<16x32xf32>
    %61 = tpu.matmul %59, %60, %cst_32 {dimension_numbers = #tpu.dot_dimension_numbers<[1], [0], [0], [1], [0, 0, 1, 1], [], []>} : vector<16x32xbf16>, vector<32x32xbf16>, vector<16x32xf32> -> vector<16x32xf32>
    %c0_33 = arith.constant 0 : index
    %c0_34 = arith.constant 0 : index
    %62 = vector.load %arg10[%c0_33, %c0_34] : memref<1x32xf32, #tpu.memory_space<vmem>>, vector<1x32xf32>
    %63 = vector.broadcast %62 : vector<1x32xf32> to vector<16x32xf32>
    %64 = arith.addf %61, %63 : vector<16x32xf32>
    %65 = vector.extract_strided_slice %64 {offsets = [0, 0], sizes = [16, 8], strides = [1, 1]} : vector<16x32xf32> to vector<16x8xf32>
    %66 = vector.extract_strided_slice %64 {offsets = [0, 8], sizes = [16, 8], strides = [1, 1]} : vector<16x32xf32> to vector<16x8xf32>
    %67 = vector.extract_strided_slice %64 {offsets = [0, 16], sizes = [16, 8], strides = [1, 1]} : vector<16x32xf32> to vector<16x8xf32>
    %68 = vector.extract_strided_slice %64 {offsets = [0, 24], sizes = [16, 8], strides = [1, 1]} : vector<16x32xf32> to vector<16x8xf32>
    %69 = arith.maximumf %65, %66 : vector<16x8xf32>
    %70 = arith.maximumf %67, %68 : vector<16x8xf32>
    %71 = arith.maximumf %69, %70 : vector<16x8xf32>
    %72 = tpu.concatenate %71, %71, %71, %71 in 1 : vector<16x8xf32>, vector<16x8xf32>, vector<16x8xf32>, vector<16x8xf32> -> vector<16x32xf32>
    %73 = arith.subf %64, %72 : vector<16x32xf32>
    %74 = math.exp %73 : vector<16x32xf32>
    %75 = vector.extract_strided_slice %74 {offsets = [0, 0], sizes = [16, 8], strides = [1, 1]} : vector<16x32xf32> to vector<16x8xf32>
    %76 = vector.extract_strided_slice %74 {offsets = [0, 8], sizes = [16, 8], strides = [1, 1]} : vector<16x32xf32> to vector<16x8xf32>
    %77 = vector.extract_strided_slice %74 {offsets = [0, 16], sizes = [16, 8], strides = [1, 1]} : vector<16x32xf32> to vector<16x8xf32>
    %78 = vector.extract_strided_slice %74 {offsets = [0, 24], sizes = [16, 8], strides = [1, 1]} : vector<16x32xf32> to vector<16x8xf32>
    %79 = arith.addf %75, %76 : vector<16x8xf32>
    %80 = arith.addf %77, %78 : vector<16x8xf32>
    %81 = arith.addf %79, %80 : vector<16x8xf32>
    %cst_35 = arith.constant 1.000000e+00 : f32
    %82 = vector.broadcast %cst_35 : f32 to vector<16x8xf32>
    %83 = arith.divf %82, %81 : vector<16x8xf32>
    %84 = tpu.concatenate %83, %83, %83, %83 in 1 : vector<16x8xf32>, vector<16x8xf32>, vector<16x8xf32>, vector<16x8xf32> -> vector<16x32xf32>
    %85 = arith.mulf %74, %84 : vector<16x32xf32>
    %cst_36 = arith.constant 0.000000e+00 : f32
    %86 = vector.broadcast %cst_36 : f32 to vector<16x32xf32>
    %87 = tpu.concatenate %64, %85, %38, %86 in 1 : vector<16x32xf32>, vector<16x32xf32>, vector<16x32xf32>, vector<16x32xf32> -> vector<16x128xf32>
    %c0_37 = arith.constant 0 : index
    %c0_38 = arith.constant 0 : index
    %88 = vector.load %arg11[%c0_37, %c0_38] : memref<16x128xf32, #tpu.memory_space<vmem>>, vector<16x128xf32>
    tpu.vector_store %arg11[%c0_37, %c0_38], %87 {strides = array<i32>} : memref<16x128xf32, #tpu.memory_space<vmem>>, vector<16x128xf32>,
    return
  }
  func.func @transform_0(%arg0: i32) -> (i32, i32) {
    %c0_i32 = arith.constant 0 : i32
    %c0_i32_0 = arith.constant 0 : i32
    return %arg0, %c0_i32 : i32, i32
  }
  func.func @transform_1(%arg0: i32) -> (i32, i32) {
    %c0_i32 = arith.constant 0 : i32
    %c0_i32_0 = arith.constant 0 : i32
    return %arg0, %c0_i32 : i32, i32
  }
  func.func @transform_2(%arg0: i32) -> (i32, i32) {
    %c0_i32 = arith.constant 0 : i32
    %c0_i32_0 = arith.constant 0 : i32
    %c0_i32_1 = arith.constant 0 : i32
    return %c0_i32, %c0_i32_0 : i32, i32
  }
  func.func @transform_3(%arg0: i32) -> (i32, i32) {
    %c0_i32 = arith.constant 0 : i32
    %c0_i32_0 = arith.constant 0 : i32
    %c0_i32_1 = arith.constant 0 : i32
    return %c0_i32, %c0_i32_0 : i32, i32
  }
  func.func @transform_4(%arg0: i32) -> (i32, i32) {
    %c0_i32 = arith.constant 0 : i32
    %c0_i32_0 = arith.constant 0 : i32
    %c0_i32_1 = arith.constant 0 : i32
    return %c0_i32, %c0_i32_0 : i32, i32
  }
  func.func @transform_5(%arg0: i32) -> (i32, i32) {
    %c0_i32 = arith.constant 0 : i32
    %c0_i32_0 = arith.constant 0 : i32
    %c0_i32_1 = arith.constant 0 : i32
    return %c0_i32, %c0_i32_0 : i32, i32
  }
  func.func @transform_6(%arg0: i32) -> (i32, i32, i32) {
    %c0_i32 = arith.constant 0 : i32
    %c0_i32_0 = arith.constant 0 : i32
    %c0_i32_1 = arith.constant 0 : i32
    %c0_i32_2 = arith.constant 0 : i32
    return %c0_i32, %c0_i32_0, %c0_i32_1 : i32, i32, i32
  }
  func.func @transform_7(%arg0: i32) -> (i32, i32, i32) {
    %c0_i32 = arith.constant 0 : i32
    %c0_i32_0 = arith.constant 0 : i32
    %c0_i32_1 = arith.constant 0 : i32
    %c0_i32_2 = arith.constant 0 : i32
    return %c0_i32, %c0_i32_0, %c0_i32_1 : i32, i32, i32
  }
  func.func @transform_8(%arg0: i32) -> (i32, i32) {
    %c0_i32 = arith.constant 0 : i32
    %c0_i32_0 = arith.constant 0 : i32
    %c0_i32_1 = arith.constant 0 : i32
    return %c0_i32, %c0_i32_0 : i32, i32
  }
  func.func @transform_9(%arg0: i32) -> (i32, i32) {
    %c0_i32 = arith.constant 0 : i32
    %c0_i32_0 = arith.constant 0 : i32
    %c0_i32_1 = arith.constant 0 : i32
    return %c0_i32, %c0_i32_0 : i32, i32
  }
  func.func @transform_10(%arg0: i32) -> (i32, i32) {
    %c0_i32 = arith.constant 0 : i32
    %c0_i32_0 = arith.constant 0 : i32
    return %arg0, %c0_i32 : i32, i32
  }
}

</mosaic_0001>

<llo_original>
// kernel: tpu_custom_call.1
$region0: #{tpu_custom_call.1}
  #allocation0 [shape = 'u32[]', space=smem, size = 0x4, offset = 0x4, fixed_abs, tag = 'smem constant byte address 0x4 - core index']
  #allocation1 [shape = 'u32[144,128]{1,0:T(1,128)}', space=vmem, size = 0x12000, scoped, tag = 'internal scratch']
  %s0 = inlined_call_operand.hbm [shape: bf16[16,48], index: 0, kind: input, shape index: {}]
  %s1 = inlined_call_operand.hbm [shape: bf16[16,32], index: 1, kind: input, shape index: {}]
  %s2 = inlined_call_operand.hbm [shape: bf16[48,384], index: 2, kind: input, shape index: {}]
  %s3 = inlined_call_operand.vmem [shape: f32[1,384], index: 3, kind: input, shape index: {}]
  %s4 = inlined_call_operand.hbm [shape: bf16[32,384], index: 4, kind: input, shape index: {}]
  %s5 = inlined_call_operand.vmem [shape: f32[1,384], index: 5, kind: input, shape index: {}]
  %s6 = inlined_call_operand.hbm [shape: bf16[2,32,32], index: 6, kind: input, shape index: {}]
  %s7 = inlined_call_operand.vmem [shape: f32[2,1,32], index: 7, kind: input, shape index: {}]
  %s8 = inlined_call_operand.vmem [shape: bf16[32,32], index: 8, kind: input, shape index: {}]
  %s9 = inlined_call_operand.vmem [shape: f32[1,32], index: 9, kind: input, shape index: {}]
  %s10 = inlined_call_operand.hbm [shape: f32[16,128], index: 10, kind: output, shape index: {}]
  %s11 = sld [smem:[#allocation0]]
  $region70: #{tpu_custom_call.1} parent=0
    _
  %s13 = ssub.s32 1, %s11
  %s14 = scalar_select 0, %s13, %s11
  $region1: #{tpu_custom_call.1} parent=0
    #allocation2 [shape = 'u8[4096]{0}', space=vmem, size = 0x1000, scoped, tag = 'input window, operand 0, single buffered']
    #allocation3 [shape = 's32[1]{0}', space=sflag, size = 0x4, scoped, tag = 'scoped memory for tpu_custom_call.1']
    #allocation4 [shape = 's32[1]{0}', space=sflag, size = 0x4, scoped, tag = 'scoped memory for tpu_custom_call.1']
    #allocation5 [shape = 'u8[4096]{0}', space=vmem, size = 0x1000, scoped, tag = 'input window, operand 1, single buffered']
    #allocation6 [shape = 's32[1]{0}', space=sflag, size = 0x4, scoped, tag = 'scoped memory for tpu_custom_call.1']
    #allocation7 [shape = 'u8[36864]{0}', space=vmem, size = 0x9000, scoped, tag = 'input window, operand 2, single buffered']
    #allocation8 [shape = 'u8[24576]{0}', space=vmem, size = 0x6000, scoped, tag = 'input window, operand 4, single buffered']
    #allocation9 [shape = 's32[1]{0}', space=sflag, size = 0x4, scoped, tag = 'scoped memory for tpu_custom_call.1']
    #allocation10 [shape = 'u8[16384]{0}', space=vmem, size = 0x4000, scoped, tag = 'input window, operand 6, single buffered']
    #allocation11 [shape = 'u8[8192]{0}', space=vmem, size = 0x2000, scoped, tag = 'output window, operand 0, single buffered']
    %15 = vsyncpa [#allocation3], 0
    %16 = vsyncpa [#allocation6], 0
    %17 = vsyncpa [#allocation9], 0
    %18 = vsyncpa [#allocation4], 0
    // Predicated region
    $region2: #{tpu_custom_call.1} parent=1 // pred_check
      _
    $region3: #{tpu_custom_call.1} parent=1 // pred_check_branch
      %20 = sbr.rel (0) target = $region5
    $region4: #{tpu_custom_call.1} parent=1 // pred_region
      %s22 = ssub.s32 128, 128
      %23 = vsyncadd [#allocation3], %s22
      %s24 = sshll.u32 [#allocation2], 4
      %s25 = int_to_ptr.vmem [resolvable:$true] %s24
      %30 = dma.hbm_to_vmem [thread:$0]  %s0, 128, %s25, [#allocation3], 64, 64, 4
    $region5: #{tpu_custom_call.1} parent=1 // pred_fallthru
      _
    // Predicated region
    $region6: #{tpu_custom_call.1} parent=1 // pred_check
      _
    $region7: #{tpu_custom_call.1} parent=1 // pred_check_branch
      %32 = sbr.rel (0) target = $region9
    $region8: #{tpu_custom_call.1} parent=1 // pred_region
      %s34 = ssub.s32 128, 128
      %35 = vsyncadd [#allocation6], %s34
      %s36 = sshll.u32 [#allocation5], 4
      %s37 = int_to_ptr.vmem [resolvable:$true] %s36
      %42 = dma.hbm_to_vmem [thread:$0]  %s1, 128, %s37, [#allocation6], 64, 64, 4
    $region9: #{tpu_custom_call.1} parent=1 // pred_fallthru
      _
    // Predicated region
    $region10: #{tpu_custom_call.1} parent=1 // pred_check
      _
    $region11: #{tpu_custom_call.1} parent=1 // pred_check_branch
      %44 = sbr.rel (0) target = $region13
    $region12: #{tpu_custom_call.1} parent=1 // pred_region
      %s46 = ssub.s32 1152, 1152
      %47 = vsyncadd [#allocation6], %s46
      %s48 = sshll.u32 [#allocation7], 4
      %s49 = int_to_ptr.vmem [resolvable:$true] %s48
      %54 = dma.hbm_to_vmem [thread:$0]  %s2, 1152, %s49, [#allocation6], 192, 192, 12
    $region13: #{tpu_custom_call.1} parent=1 // pred_fallthru
      _
    // Predicated region
    $region14: #{tpu_custom_call.1} parent=1 // pred_check
      _
    $region15: #{tpu_custom_call.1} parent=1 // pred_check_branch
      %56 = sbr.rel (0) target = $region17
    $region16: #{tpu_custom_call.1} parent=1 // pred_region
      _
    $region17: #{tpu_custom_call.1} parent=1 // pred_fallthru
      _
    // Predicated region
    $region18: #{tpu_custom_call.1} parent=1 // pred_check
      _
    $region19: #{tpu_custom_call.1} parent=1 // pred_check_branch
      %58 = sbr.rel (0) target = $region21
    $region20: #{tpu_custom_call.1} parent=1 // pred_region
      %s60 = ssub.s32 768, 768
      %61 = vsyncadd [#allocation9], %s60
      %s62 = sshll.u32 [#allocation8], 4
      %s63 = int_to_ptr.vmem [resolvable:$true] %s62
      %68 = dma.hbm_to_vmem [thread:$0]  %s4, 768, %s63, [#allocation9], 192, 192, 12
    $region21: #{tpu_custom_call.1} parent=1 // pred_fallthru
      _
    // Predicated region
    $region22: #{tpu_custom_call.1} parent=1 // pred_check
      _
    $region23: #{tpu_custom_call.1} parent=1 // pred_check_branch
      %70 = sbr.rel (0) target = $region25
    $region24: #{tpu_custom_call.1} parent=1 // pred_region
      _
    $region25: #{tpu_custom_call.1} parent=1 // pred_fallthru
      _
    // Predicated region
    $region26: #{tpu_custom_call.1} parent=1 // pred_check
      _
    $region27: #{tpu_custom_call.1} parent=1 // pred_check_branch
      %72 = sbr.rel (0) target = $region29
    $region28: #{tpu_custom_call.1} parent=1 // pred_region
      %s74 = ssub.s32 512, 512
      %75 = vsyncadd [#allocation9], %s74
      %s76 = sshll.u32 [#allocation10], 4
      %s77 = int_to_ptr.vmem [resolvable:$true] %s76
      %82 = dma.hbm_to_vmem [thread:$0]  %s6, 512, %s77, [#allocation9], 64, 64, 4
    $region29: #{tpu_custom_call.1} parent=1 // pred_fallthru
      _
    // Predicated region
    $region30: #{tpu_custom_call.1} parent=1 // pred_check
      _
    $region31: #{tpu_custom_call.1} parent=1 // pred_check_branch
      %84 = sbr.rel (0) target = $region33
    $region32: #{tpu_custom_call.1} parent=1 // pred_region
      _
    $region33: #{tpu_custom_call.1} parent=1 // pred_fallthru
      _
    // Predicated region
    $region34: #{tpu_custom_call.1} parent=1 // pred_check
      _
    $region35: #{tpu_custom_call.1} parent=1 // pred_check_branch
      %86 = sbr.rel (0) target = $region37
    $region36: #{tpu_custom_call.1} parent=1 // pred_region
      _
    $region37: #{tpu_custom_call.1} parent=1 // pred_fallthru
      _
    // Predicated region
    $region38: #{tpu_custom_call.1} parent=1 // pred_check
      _
    $region39: #{tpu_custom_call.1} parent=1 // pred_check_branch
      %88 = sbr.rel (0) target = $region41
    $region40: #{tpu_custom_call.1} parent=1 // pred_region
      _
    $region41: #{tpu_custom_call.1} parent=1 // pred_fallthru
      _
    // Predicated region
    $region42: #{tpu_custom_call.1} parent=1 // pred_check
      _
    $region43: #{tpu_custom_call.1} parent=1 // pred_check_branch
      %90 = sbr.rel (0) target = $region45
    $region44: #{tpu_custom_call.1} parent=1 // pred_region
      %91 = dma.done [#allocation3], 128
    $region45: #{tpu_custom_call.1} parent=1 // pred_fallthru
      _
    // Predicated region
    $region46: #{tpu_custom_call.1} parent=1 // pred_check
      _
    $region47: #{tpu_custom_call.1} parent=1 // pred_check_branch
      %93 = sbr.rel (0) target = $region49
    $region48: #{tpu_custom_call.1} parent=1 // pred_region
      %94 = dma.done [#allocation6], 128
    $region49: #{tpu_custom_call.1} parent=1 // pred_fallthru
      _
    // Predicated region
    $region50: #{tpu_custom_call.1} parent=1 // pred_check
      _
    $region51: #{tpu_custom_call.1} parent=1 // pred_check_branch
      %96 = sbr.rel (0) target = $region53
    $region52: #{tpu_custom_call.1} parent=1 // pred_region
      %97 = dma.done [#allocation6], 1152
    $region53: #{tpu_custom_call.1} parent=1 // pred_fallthru
      _
    // Predicated region
    $region54: #{tpu_custom_call.1} parent=1 // pred_check
      _
    $region55: #{tpu_custom_call.1} parent=1 // pred_check_branch
      %99 = sbr.rel (0) target = $region57
    $region56: #{tpu_custom_call.1} parent=1 // pred_region
      %100 = dma.done [#allocation9], 768
    $region57: #{tpu_custom_call.1} parent=1 // pred_fallthru
      _
    // Predicated region
    $region58: #{tpu_custom_call.1} parent=1 // pred_check
      _
    $region59: #{tpu_custom_call.1} parent=1 // pred_check_branch
      %102 = sbr.rel (0) target = $region61
    $region60: #{tpu_custom_call.1} parent=1 // pred_region
      %103 = dma.done [#allocation9], 512
    $region61: #{tpu_custom_call.1} parent=1 // pred_fallthru
      _
    %v105 = vld [vmem:[#allocation2] sm:$0xf]
    %v106 = vld [vmem:[#allocation2 + $0x4] sm:$0xf]
    %v107 = vld [vmem:[#allocation5] sm:$0xf]
    %v108 = vld [vmem:[#allocation5 + $0x4] sm:$0xf]
    %v109 = vunpack.c.l.bf16 %v107
    %v110 = vunpack.c.l.bf16 %v108
    %v111 = vld [vmem:[#allocation7] sm:$0xff]
    %v112 = vld [vmem:[#allocation7 + $0x8] sm:$0xf]
    %v113 = vld [vmem:[#allocation7 + $0xc] sm:$0xff]
    %v114 = vld [vmem:[#allocation7 + $0x14] sm:$0xf]
    %v115 = vld [vmem:[#allocation7 + $0x18] sm:$0xff]
    %v116 = vld [vmem:[#allocation7 + $0x20] sm:$0xf]
    %v117 = vld [vmem:[#allocation7 + $0x24] sm:$0xff]
    %v118 = vld [vmem:[#allocation7 + $0x2c] sm:$0xf]
    %v119 = vld [vmem:[#allocation7 + $0x30] sm:$0xff]
    %v120 = vld [vmem:[#allocation7 + $0x38] sm:$0xf]
    %v121 = vld [vmem:[#allocation7 + $0x3c] sm:$0xff]
    %v122 = vld [vmem:[#allocation7 + $0x44] sm:$0xf]
    %v123 = vld [vmem:[%s3] sm:$0x7]
    %v125 = vlaneseq
    %v126 = vshrl.u32 %v125, 7
    %v127 = vsub.s32 0, %v126
    %v128 = vrot.slane %v123, %v127
    %v129 = vlaneseq
    %v130 = vshrl.u32 %v129, 7
    %v131 = vsub.s32 1, %v130
    %v132 = vrot.slane %v123, %v131
    %v133 = vlaneseq
    %v134 = vshrl.u32 %v133, 7
    %v135 = vsub.s32 2, %v134
    %v136 = vrot.slane %v123, %v135
    %v142 = vunpack.c.l.b16 %v105
    %v143 = vunpack.c.l.b16 %v106
    %v144 = vpack.c.b16 %v143, %v142
    %v157 = vunpack.c.l.b16 %v111
    %v158 = vunpack.c.h.b16 %v111
    %v159 = vunpack.c.l.b16 %v112
    %v160 = vunpack.c.l.b16 %v113
    %v161 = vunpack.c.h.b16 %v113
    %v162 = vunpack.c.l.b16 %v114
    %v163 = vunpack.c.l.b16 %v115
    %v164 = vunpack.c.h.b16 %v115
    %v165 = vunpack.c.l.b16 %v116
    %v166 = vunpack.c.l.b16 %v117
    %v167 = vunpack.c.h.b16 %v117
    %v168 = vunpack.c.l.b16 %v118
    %v169 = vunpack.c.l.b16 %v119
    %v170 = vunpack.c.h.b16 %v119
    %v171 = vunpack.c.l.b16 %v120
    %v172 = vunpack.c.l.b16 %v121
    %v173 = vunpack.c.h.b16 %v121
    %v174 = vunpack.c.l.b16 %v122
    %v175 = vpack.c.b16 %v160, %v157
    %v176 = vpack.c.b16 %v161, %v158
    %v177 = vpack.c.b16 %v162, %v159
    %v178 = vpack.c.b16 %v166, %v163
    %v179 = vpack.c.b16 %v167, %v164
    %v180 = vpack.c.b16 %v168, %v165
    %v181 = vpack.c.b16 %v172, %v169
    %v182 = vpack.c.b16 %v173, %v170
    %v183 = vpack.c.b16 %v174, %v171
    %vm193 = vcmask 392192
    %v195 = vsel %vm193, %v144, 0
    %197 = vmatprep.subr.bf16.mxu0 %v176
    %198 = vmatpush1.bf16.msra.mxu0 %v175
    %199 = vmatprep.subr.bf16.mxu0 %v179
    %200 = vmatpush1.bf16.msra.mxu0 %v178
    %201 = vmatprep.subr.bf16.mxu0 %v182
    %202 = vmatpush1.bf16.msra.mxu0 %v181
    %203 = vmatprep.subr.bf16.mxu0 0
    %204 = vmatpush1.bf16.msra.mxu0 0
    %205 = vmatprep.subr.bf16.mxu0 0
    %206 = vmatpush1.bf16.msra.mxu0 0
    %207 = vmatprep.subr.bf16.mxu0 0
    %208 = vmatpush1.bf16.msra.mxu0 0
    %209 = vmatprep.subr.bf16.mxu0 0
    %210 = vmatpush1.bf16.msra.mxu0 0
    %211 = vmatprep.subr.bf16.mxu0 0
    %212 = vmatpush1.bf16.msra.mxu0 0
    %213 = vmatprep.subr.bf16.mxu0 0
    %214 = vmatpush1.bf16.msra.mxu0 0
    %215 = vmatprep.subr.bf16.mxu0 0
    %216 = vmatpush1.bf16.msra.mxu0 0
    %217 = vmatprep.subr.bf16.mxu0 0
    %218 = vmatpush1.bf16.msra.mxu0 0
    %219 = vmatprep.subr.bf16.mxu0 0
    %220 = vmatpush1.bf16.msra.mxu0 0
    %221 = vmatprep.subr.bf16.mxu0 0
    %222 = vmatpush1.bf16.msra.mxu0 0
    %223 = vmatprep.subr.bf16.mxu0 0
    %224 = vmatpush1.bf16.msra.mxu0 0
    %225 = vmatprep.subr.bf16.mxu0 0
    %226 = vmatpush1.bf16.msra.mxu0 0
    %227 = vmatprep.subr.bf16.mxu0 0
    %228 = vmatpush1.bf16.msra.mxu0 0
    %229 = vmatprep.mubr.bf16.mxu0 0
    %230 = vmatmul.mubr.bf16.gmra.mrb[0].mxu0 %v195
    %v231 = vpop.f32.mrb[0].mxu0
    %v232 = vadd.f32 %v128, %v231
    %v233 = vpop.f32.mrb[0].mxu0
    %v234 = vadd.f32 %v132, %v233
    %v235 = vpop.f32.mrb[0].mxu0
    %v236 = vadd.f32 %v128, %v235
    %v237 = vpop.f32.mrb[0].mxu0
    %v238 = vadd.f32 %v132, %v237
    %239 = vdwg.mxu0
    %240 = vmatprep.subr.bf16.mxu0 0
    %241 = vmatpush1.bf16.msra.mxu0 %v177
    %242 = vmatprep.subr.bf16.mxu0 0
    %243 = vmatpush1.bf16.msra.mxu0 %v180
    %244 = vmatprep.subr.bf16.mxu0 0
    %245 = vmatpush1.bf16.msra.mxu0 %v183
    %246 = vmatprep.subr.bf16.mxu0 0
    %247 = vmatpush1.bf16.msra.mxu0 0
    %248 = vmatprep.subr.bf16.mxu0 0
    %249 = vmatpush1.bf16.msra.mxu0 0
    %250 = vmatprep.subr.bf16.mxu0 0
    %251 = vmatpush1.bf16.msra.mxu0 0
    %252 = vmatprep.subr.bf16.mxu0 0
    %253 = vmatpush1.bf16.msra.mxu0 0
    %254 = vmatprep.subr.bf16.mxu0 0
    %255 = vmatpush1.bf16.msra.mxu0 0
    %256 = vmatprep.subr.bf16.mxu0 0
    %257 = vmatpush1.bf16.msra.mxu0 0
    %258 = vmatprep.subr.bf16.mxu0 0
    %259 = vmatpush1.bf16.msra.mxu0 0
    %260 = vmatprep.subr.bf16.mxu0 0
    %261 = vmatpush1.bf16.msra.mxu0 0
    %262 = vmatprep.subr.bf16.mxu0 0
    %263 = vmatpush1.bf16.msra.mxu0 0
    %264 = vmatprep.subr.bf16.mxu0 0
    %265 = vmatpush1.bf16.msra.mxu0 0
    %266 = vmatprep.subr.bf16.mxu0 0
    %267 = vmatpush1.bf16.msra.mxu0 0
    %268 = vmatprep.subr.bf16.mxu0 0
    %269 = vmatpush1.bf16.msra.mxu0 0
    %270 = vmatprep.subr.bf16.mxu0 0
    %271 = vmatpush1.bf16.msra.mxu0 0
    %272 = vmatprep.mubr.bf16.mxu0 0
    %273 = vmatmul.mubr.bf16.gmra.mrb[0].mxu0 %v195
    %v274 = vpop.f32.mrb[0].mxu0
    %v275 = vadd.f32 %v136, %v274
    %v276 = vpop.f32.mrb[0].mxu0
    %v277 = vpop.f32.mrb[0].mxu0
    %v278 = vadd.f32 %v136, %v277
    %v279 = vpop.f32.mrb[0].mxu0
    %280 = vdwg.mxu0
    %v281 = vld [vmem:[#allocation8] sm:$0xff]
    %v282 = vld [vmem:[#allocation8 + $0x8] sm:$0xf]
    %v283 = vld [vmem:[#allocation8 + $0xc] sm:$0xff]
    %v284 = vld [vmem:[#allocation8 + $0x14] sm:$0xf]
    %v285 = vld [vmem:[#allocation8 + $0x18] sm:$0xff]
    %v286 = vld [vmem:[#allocation8 + $0x20] sm:$0xf]
    %v287 = vld [vmem:[#allocation8 + $0x24] sm:$0xff]
    %v288 = vld [vmem:[#allocation8 + $0x2c] sm:$0xf]
    %v289 = vld [vmem:[%s5] sm:$0x7]
    %v291 = vlaneseq
    %v292 = vshrl.u32 %v291, 7
    %v293 = vsub.s32 0, %v292
    %v294 = vrot.slane %v289, %v293
    %v295 = vlaneseq
    %v296 = vshrl.u32 %v295, 7
    %v297 = vsub.s32 1, %v296
    %v298 = vrot.slane %v289, %v297
    %v299 = vlaneseq
    %v300 = vshrl.u32 %v299, 7
    %v301 = vsub.s32 2, %v300
    %v302 = vrot.slane %v289, %v301
    %v308 = vunpack.c.l.b16 %v107
    %v309 = vunpack.c.l.b16 %v108
    %v310 = vpack.c.b16 %v309, %v308
    %v319 = vunpack.c.l.b16 %v281
    %v320 = vunpack.c.h.b16 %v281
    %v321 = vunpack.c.l.b16 %v282
    %v322 = vunpack.c.l.b16 %v283
    %v323 = vunpack.c.h.b16 %v283
    %v324 = vunpack.c.l.b16 %v284
    %v325 = vunpack.c.l.b16 %v285
    %v326 = vunpack.c.h.b16 %v285
    %v327 = vunpack.c.l.b16 %v286
    %v328 = vunpack.c.l.b16 %v287
    %v329 = vunpack.c.h.b16 %v287
    %v330 = vunpack.c.l.b16 %v288
    %v331 = vpack.c.b16 %v322, %v319
    %v332 = vpack.c.b16 %v323, %v320
    %v333 = vpack.c.b16 %v324, %v321
    %v334 = vpack.c.b16 %v328, %v325
    %v335 = vpack.c.b16 %v329, %v326
    %v336 = vpack.c.b16 %v330, %v327
    %vm343 = vcmask 261120
    %v345 = vsel %vm343, %v310, 0
    %347 = vmatprep.subr.bf16.mxu0 %v332
    %348 = vmatpush1.bf16.msra.mxu0 %v331
    %349 = vmatprep.subr.bf16.mxu0 %v335
    %350 = vmatpush1.bf16.msra.mxu0 %v334
    %351 = vmatprep.subr.bf16.mxu0 0
    %352 = vmatpush1.bf16.msra.mxu0 0
    %353 = vmatprep.subr.bf16.mxu0 0
    %354 = vmatpush1.bf16.msra.mxu0 0
    %355 = vmatprep.subr.bf16.mxu0 0
    %356 = vmatpush1.bf16.msra.mxu0 0
    %357 = vmatprep.subr.bf16.mxu0 0
    %358 = vmatpush1.bf16.msra.mxu0 0
    %359 = vmatprep.subr.bf16.mxu0 0
    %360 = vmatpush1.bf16.msra.mxu0 0
    %361 = vmatprep.subr.bf16.mxu0 0
    %362 = vmatpush1.bf16.msra.mxu0 0
    %363 = vmatprep.subr.bf16.mxu0 0
    %364 = vmatpush1.bf16.msra.mxu0 0
    %365 = vmatprep.subr.bf16.mxu0 0
    %366 = vmatpush1.bf16.msra.mxu0 0
    %367 = vmatprep.subr.bf16.mxu0 0
    %368 = vmatpush1.bf16.msra.mxu0 0
    %369 = vmatprep.subr.bf16.mxu0 0
    %370 = vmatpush1.bf16.msra.mxu0 0
    %371 = vmatprep.subr.bf16.mxu0 0
    %372 = vmatpush1.bf16.msra.mxu0 0
    %373 = vmatprep.subr.bf16.mxu0 0
    %374 = vmatpush1.bf16.msra.mxu0 0
    %375 = vmatprep.subr.bf16.mxu0 0
    %376 = vmatpush1.bf16.msra.mxu0 0
    %377 = vmatprep.subr.bf16.mxu0 0
    %378 = vmatpush1.bf16.msra.mxu0 0
    %379 = vmatprep.mubr.bf16.mxu0 0
    %380 = vmatmul.mubr.bf16.gmra.mrb[0].mxu0 %v345
    %v381 = vpop.f32.mrb[0].mxu0
    %v382 = vadd.f32 %v294, %v381
    %v383 = vpop.f32.mrb[0].mxu0
    %v384 = vadd.f32 %v298, %v383
    %v385 = vpop.f32.mrb[0].mxu0
    %v386 = vadd.f32 %v294, %v385
    %v387 = vpop.f32.mrb[0].mxu0
    %v388 = vadd.f32 %v298, %v387
    %389 = vdwg.mxu0
    %390 = vmatprep.subr.bf16.mxu0 0
    %391 = vmatpush1.bf16.msra.mxu0 %v333
    %392 = vmatprep.subr.bf16.mxu0 0
    %393 = vmatpush1.bf16.msra.mxu0 %v336
    %394 = vmatprep.subr.bf16.mxu0 0
    %395 = vmatpush1.bf16.msra.mxu0 0
    %396 = vmatprep.subr.bf16.mxu0 0
    %397 = vmatpush1.bf16.msra.mxu0 0
    %398 = vmatprep.subr.bf16.mxu0 0
    %399 = vmatpush1.bf16.msra.mxu0 0
    %400 = vmatprep.subr.bf16.mxu0 0
    %401 = vmatpush1.bf16.msra.mxu0 0
    %402 = vmatprep.subr.bf16.mxu0 0
    %403 = vmatpush1.bf16.msra.mxu0 0
    %404 = vmatprep.subr.bf16.mxu0 0
    %405 = vmatpush1.bf16.msra.mxu0 0
    %406 = vmatprep.subr.bf16.mxu0 0
    %407 = vmatpush1.bf16.msra.mxu0 0
    %408 = vmatprep.subr.bf16.mxu0 0
    %409 = vmatpush1.bf16.msra.mxu0 0
    %410 = vmatprep.subr.bf16.mxu0 0
    %411 = vmatpush1.bf16.msra.mxu0 0
    %412 = vmatprep.subr.bf16.mxu0 0
    %413 = vmatpush1.bf16.msra.mxu0 0
    %414 = vmatprep.subr.bf16.mxu0 0
    %415 = vmatpush1.bf16.msra.mxu0 0
    %416 = vmatprep.subr.bf16.mxu0 0
    %417 = vmatpush1.bf16.msra.mxu0 0
    %418 = vmatprep.subr.bf16.mxu0 0
    %419 = vmatpush1.bf16.msra.mxu0 0
    %420 = vmatprep.subr.bf16.mxu0 0
    %421 = vmatpush1.bf16.msra.mxu0 0
    %422 = vmatprep.mubr.bf16.mxu0 0
    %423 = vmatmul.mubr.bf16.gmra.mrb[0].mxu0 %v345
    %v424 = vpop.f32.mrb[0].mxu0
    %v425 = vadd.f32 %v302, %v424
    %v426 = vpop.f32.mrb[0].mxu0
    %v427 = vpop.f32.mrb[0].mxu0
    %v428 = vadd.f32 %v302, %v427
    %v429 = vpop.f32.mrb[0].mxu0
    %430 = vdwg.mxu0
    %v431 = vadd.f32 %v232, %v382
    %v432 = vadd.f32 %v236, %v386
    %v433 = vxor.u32 %v431, 2147483648
    %v434 = vxor.u32 %v432, 2147483648
    %v435 = vmul.f32 %v433, 1.442695
    %v436 = vpow.pop %v435
    %v437 = vmul.f32 %v434, 1.442695
    %v438 = vpow.pop %v437
    %v439 = vadd.f32 %v436, 1.0
    %v440 = vadd.f32 %v438, 1.0
    %v441 = vrcp.pop %v439
    %v442 = vmul.f32 1.0, %v441
    %v443 = vrcp.pop %v440
    %v444 = vmul.f32 1.0, %v443
    %v445 = vadd.f32 %v234, %v384
    %v446 = vadd.f32 %v238, %v388
    %v447 = vxor.u32 %v445, 2147483648
    %v448 = vxor.u32 %v446, 2147483648
    %v449 = vmul.f32 %v447, 1.442695
    %v450 = vpow.pop %v449
    %v451 = vmul.f32 %v448, 1.442695
    %v452 = vpow.pop %v451
    %v453 = vadd.f32 %v450, 1.0
    %v454 = vadd.f32 %v452, 1.0
    %v455 = vrcp.pop %v453
    %v456 = vmul.f32 1.0, %v455
    %v457 = vrcp.pop %v454
    %v458 = vmul.f32 1.0, %v457
    %v459 = vmul.f32 %v442, %v425
    %v460 = vmul.f32 %v444, %v428
    %v461 = vadd.f32 %v275, %v459
    %v462 = vadd.f32 %v278, %v460
    %v463 = vtanh.pop %v461
    %v464 = vtanh.pop %v462
    %v465 = vsub.f32 1.0, %v456
    %v466 = vsub.f32 1.0, %v458
    %v467 = vmul.f32 %v465, %v463
    %v468 = vmul.f32 %v466, %v464
    %v469 = vmul.f32 %v456, %v109
    %v470 = vmul.f32 %v458, %v110
    %v471 = vadd.f32 %v467, %v469
    %v472 = vadd.f32 %v468, %v470
    %v473 = vpack.c.bf16 %v472, %v471
    %v474 = vld [vmem:[#allocation10] sm:$0xf]
    %v475 = vld [vmem:[#allocation10 + $0x4] sm:$0xf]
    %v476 = vld [vmem:[#allocation10 + $0x8] sm:$0xf]
    %v477 = vld [vmem:[#allocation10 + $0xc] sm:$0xf]
    %v478 = vld [vmem:[%s7] sm:$0x1]
    %v480 = vlaneseq
    %v481 = vshrl.u32 %v480, 7
    %v482 = vsub.s32 0, %v481
    %v483 = vrot.slane %v478, %v482
    %v489 = vunpack.c.l.b16 %v474
    %v490 = vunpack.c.l.b16 %v475
    %v491 = vunpack.c.l.b16 %v476
    %v492 = vunpack.c.l.b16 %v477
    %v493 = vpack.c.b16 %v490, %v489
    %v494 = vpack.c.b16 %v492, %v491
    %v498 = vsel %vm343, %v473, 0
    %500 = vmatprep.subr.bf16.mxu0 0
    %501 = vmatpush1.bf16.msra.mxu0 %v493
    %502 = vmatprep.subr.bf16.mxu0 0
    %503 = vmatpush1.bf16.msra.mxu0 %v494
    %504 = vmatprep.subr.bf16.mxu0 0
    %505 = vmatpush1.bf16.msra.mxu0 0
    %506 = vmatprep.subr.bf16.mxu0 0
    %507 = vmatpush1.bf16.msra.mxu0 0
    %508 = vmatprep.subr.bf16.mxu0 0
    %509 = vmatpush1.bf16.msra.mxu0 0
    %510 = vmatprep.subr.bf16.mxu0 0
    %511 = vmatpush1.bf16.msra.mxu0 0
    %512 = vmatprep.subr.bf16.mxu0 0
    %513 = vmatpush1.bf16.msra.mxu0 0
    %514 = vmatprep.subr.bf16.mxu0 0
    %515 = vmatpush1.bf16.msra.mxu0 0
    %516 = vmatprep.subr.bf16.mxu0 0
    %517 = vmatpush1.bf16.msra.mxu0 0
    %518 = vmatprep.subr.bf16.mxu0 0
    %519 = vmatpush1.bf16.msra.mxu0 0
    %520 = vmatprep.subr.bf16.mxu0 0
    %521 = vmatpush1.bf16.msra.mxu0 0
    %522 = vmatprep.subr.bf16.mxu0 0
    %523 = vmatpush1.bf16.msra.mxu0 0
    %524 = vmatprep.subr.bf16.mxu0 0
    %525 = vmatpush1.bf16.msra.mxu0 0
    %526 = vmatprep.subr.bf16.mxu0 0
    %527 = vmatpush1.bf16.msra.mxu0 0
    %528 = vmatprep.subr.bf16.mxu0 0
    %529 = vmatpush1.bf16.msra.mxu0 0
    %530 = vmatprep.subr.bf16.mxu0 0
    %531 = vmatpush1.bf16.msra.mxu0 0
    %532 = vmatprep.mubr.bf16.mxu0 0
    %533 = vmatmul.mubr.bf16.gmra.mrb[0].mxu0 %v498
    %v534 = vpop.f32.mrb[0].mxu0
    %v535 = vadd.f32 %v483, %v534
    %v536 = vpop.f32.mrb[0].mxu0
    %v537 = vpop.f32.mrb[0].mxu0
    %v538 = vadd.f32 %v483, %v537
    %v539 = vpop.f32.mrb[0].mxu0
    %540 = vdwg.mxu0
    %v541 = vmax.f32 %v535, 0.0
    %v542 = vmax.f32 %v538, 0.0
    %v543 = vpack.c.bf16 %v542, %v541
    %s544 = scalar_lea.vmem [#allocation10], 16
    %v545 = vld [vmem:[%s544] sm:$0xf]
    %v546 = vld [vmem:[%s544 + $0x4] sm:$0xf]
    %v547 = vld [vmem:[%s544 + $0x8] sm:$0xf]
    %v548 = vld [vmem:[%s544 + $0xc] sm:$0xf]
    %s549 = scalar_lea.vmem %s7, 1
    %v550 = vld [vmem:[%s549] sm:$0x1]
    %v552 = vlaneseq
    %v553 = vshrl.u32 %v552, 7
    %v554 = vsub.s32 0, %v553
    %v555 = vrot.slane %v550, %v554
    %v561 = vunpack.c.l.b16 %v545
    %v562 = vunpack.c.l.b16 %v546
    %v563 = vunpack.c.l.b16 %v547
    %v564 = vunpack.c.l.b16 %v548
    %v565 = vpack.c.b16 %v562, %v561
    %v566 = vpack.c.b16 %v564, %v563
    %v570 = vsel %vm343, %v543, 0
    %572 = vmatprep.subr.bf16.mxu0 0
    %573 = vmatpush1.bf16.msra.mxu0 %v565
    %574 = vmatprep.subr.bf16.mxu0 0
    %575 = vmatpush1.bf16.msra.mxu0 %v566
    %576 = vmatprep.subr.bf16.mxu0 0
    %577 = vmatpush1.bf16.msra.mxu0 0
    %578 = vmatprep.subr.bf16.mxu0 0
    %579 = vmatpush1.bf16.msra.mxu0 0
    %580 = vmatprep.subr.bf16.mxu0 0
    %581 = vmatpush1.bf16.msra.mxu0 0
    %582 = vmatprep.subr.bf16.mxu0 0
    %583 = vmatpush1.bf16.msra.mxu0 0
    %584 = vmatprep.subr.bf16.mxu0 0
    %585 = vmatpush1.bf16.msra.mxu0 0
    %586 = vmatprep.subr.bf16.mxu0 0
    %587 = vmatpush1.bf16.msra.mxu0 0
    %588 = vmatprep.subr.bf16.mxu0 0
    %589 = vmatpush1.bf16.msra.mxu0 0
    %590 = vmatprep.subr.bf16.mxu0 0
    %591 = vmatpush1.bf16.msra.mxu0 0
    %592 = vmatprep.subr.bf16.mxu0 0
    %593 = vmatpush1.bf16.msra.mxu0 0
    %594 = vmatprep.subr.bf16.mxu0 0
    %595 = vmatpush1.bf16.msra.mxu0 0
    %596 = vmatprep.subr.bf16.mxu0 0
    %597 = vmatpush1.bf16.msra.mxu0 0
    %598 = vmatprep.subr.bf16.mxu0 0
    %599 = vmatpush1.bf16.msra.mxu0 0
    %600 = vmatprep.subr.bf16.mxu0 0
    %601 = vmatpush1.bf16.msra.mxu0 0
    %602 = vmatprep.subr.bf16.mxu0 0
    %603 = vmatpush1.bf16.msra.mxu0 0
    %604 = vmatprep.mubr.bf16.mxu0 0
    %605 = vmatmul.mubr.bf16.gmra.mrb[0].mxu0 %v570
    %v606 = vpop.f32.mrb[0].mxu0
    %v607 = vadd.f32 %v555, %v606
    %v608 = vpop.f32.mrb[0].mxu0
    %v609 = vpop.f32.mrb[0].mxu0
    %v610 = vadd.f32 %v555, %v609
    %v611 = vpop.f32.mrb[0].mxu0
    %612 = vdwg.mxu0
    %v613 = vmax.f32 %v607, 0.0
    %v614 = vmax.f32 %v610, 0.0
    %v615 = vpack.c.bf16 %v614, %v613
    %v616 = vld [vmem:[%s8] sm:$0xf]
    %v617 = vld [vmem:[%s8 + $0x4] sm:$0xf]
    %v618 = vld [vmem:[%s8 + $0x8] sm:$0xf]
    %v619 = vld [vmem:[%s8 + $0xc] sm:$0xf]
    %v620 = vld [vmem:[%s9] sm:$0x1]
    %v622 = vlaneseq
    %v623 = vshrl.u32 %v622, 7
    %v624 = vsub.s32 0, %v623
    %v625 = vrot.slane %v620, %v624
    %v631 = vunpack.c.l.b16 %v616
    %v632 = vunpack.c.l.b16 %v617
    %v633 = vunpack.c.l.b16 %v618
    %v634 = vunpack.c.l.b16 %v619
    %v635 = vpack.c.b16 %v632, %v631
    %v636 = vpack.c.b16 %v634, %v633
    %v640 = vsel %vm343, %v615, 0
    %642 = vmatprep.subr.bf16.mxu0 0
    %643 = vmatpush1.bf16.msra.mxu0 %v635
    %644 = vmatprep.subr.bf16.mxu0 0
    %645 = vmatpush1.bf16.msra.mxu0 %v636
    %646 = vmatprep.subr.bf16.mxu0 0
    %647 = vmatpush1.bf16.msra.mxu0 0
    %648 = vmatprep.subr.bf16.mxu0 0
    %649 = vmatpush1.bf16.msra.mxu0 0
    %650 = vmatprep.subr.bf16.mxu0 0
    %651 = vmatpush1.bf16.msra.mxu0 0
    %652 = vmatprep.subr.bf16.mxu0 0
    %653 = vmatpush1.bf16.msra.mxu0 0
    %654 = vmatprep.subr.bf16.mxu0 0
    %655 = vmatpush1.bf16.msra.mxu0 0
    %656 = vmatprep.subr.bf16.mxu0 0
    %657 = vmatpush1.bf16.msra.mxu0 0
    %658 = vmatprep.subr.bf16.mxu0 0
    %659 = vmatpush1.bf16.msra.mxu0 0
    %660 = vmatprep.subr.bf16.mxu0 0
    %661 = vmatpush1.bf16.msra.mxu0 0
    %662 = vmatprep.subr.bf16.mxu0 0
    %663 = vmatpush1.bf16.msra.mxu0 0
    %664 = vmatprep.subr.bf16.mxu0 0
    %665 = vmatpush1.bf16.msra.mxu0 0
    %666 = vmatprep.subr.bf16.mxu0 0
    %667 = vmatpush1.bf16.msra.mxu0 0
    %668 = vmatprep.subr.bf16.mxu0 0
    %669 = vmatpush1.bf16.msra.mxu0 0
    %670 = vmatprep.subr.bf16.mxu0 0
    %671 = vmatpush1.bf16.msra.mxu0 0
    %672 = vmatprep.subr.bf16.mxu0 0
    %673 = vmatpush1.bf16.msra.mxu0 0
    %674 = vmatprep.mubr.bf16.mxu0 0
    %675 = vmatmul.mubr.bf16.gmra.mrb[0].mxu0 %v640
    %v676 = vpop.f32.mrb[0].mxu0
    %v677 = vadd.f32 %v625, %v676
    %v678 = vpop.f32.mrb[0].mxu0
    %v679 = vpop.f32.mrb[0].mxu0
    %v680 = vadd.f32 %v625, %v679
    %v681 = vpop.f32.mrb[0].mxu0
    %682 = vdwg.mxu0
    %685 = vrot.lane.b32.xlu0 %v677, 120
    %v686 = vpop.permute.xlu0 %685
    %687 = vrot.lane.b32.xlu0 %v680, 120
    %v688 = vpop.permute.xlu0 %687
    %v691 = vmax.f32 %v677, %v686
    %v692 = vmax.f32 %v680, %v688
    %695 = vrot.lane.b32.xlu0 %v691, 112
    %v696 = vpop.permute.xlu0 %695
    %697 = vrot.lane.b32.xlu0 %v692, 112
    %v698 = vpop.permute.xlu0 %697
    %v701 = vmax.f32 %v691, %v696
    %v702 = vmax.f32 %v692, %v698
    %705 = vrot.lane.b32.xlu0 %v701, 8
    %v706 = vpop.permute.xlu0 %705
    %707 = vrot.lane.b32.xlu0 %v702, 8
    %v708 = vpop.permute.xlu0 %707
    %711 = vrot.lane.b32.xlu0 %v701, 16
    %v712 = vpop.permute.xlu0 %711
    %713 = vrot.lane.b32.xlu0 %v702, 16
    %v714 = vpop.permute.xlu0 %713
    %717 = vrot.lane.b32.xlu0 %v701, 24
    %v718 = vpop.permute.xlu0 %717
    %719 = vrot.lane.b32.xlu0 %v702, 24
    %v720 = vpop.permute.xlu0 %719
    %vm723 = vcmask 64512
    %v724 = vsel %vm723, %v701, %v706
    %v725 = vsel %vm723, %v702, %v708
    %vm726 = vcmask 130048
    %v727 = vsel %vm726, %v724, %v712
    %v728 = vsel %vm726, %v725, %v714
    %vm729 = vcmask 195584
    %v730 = vsel %vm729, %v727, %v718
    %v731 = vsel %vm729, %v728, %v720
    %v732 = vsub.f32 %v677, %v730
    %v733 = vsub.f32 %v680, %v731
    %v734 = vmul.f32 %v732, 1.442695
    %v735 = vpow.pop %v734
    %v736 = vmul.f32 %v733, 1.442695
    %v737 = vpow.pop %v736
    %740 = vrot.lane.b32.xlu0 %v735, 120
    %v741 = vpop.permute.xlu0 %740
    %742 = vrot.lane.b32.xlu0 %v737, 120
    %v743 = vpop.permute.xlu0 %742
    %v746 = vadd.f32 %v735, %v741
    %v747 = vadd.f32 %v737, %v743
    %750 = vrot.lane.b32.xlu0 %v746, 112
    %v751 = vpop.permute.xlu0 %750
    %752 = vrot.lane.b32.xlu0 %v747, 112
    %v753 = vpop.permute.xlu0 %752
    %v756 = vadd.f32 %v746, %v751
    %v757 = vadd.f32 %v747, %v753
    %v758 = vrcp.pop %v756
    %v759 = vmul.f32 1.0, %v758
    %v760 = vrcp.pop %v757
    %v761 = vmul.f32 1.0, %v760
    %764 = vrot.lane.b32.xlu0 %v759, 8
    %v765 = vpop.permute.xlu0 %764
    %766 = vrot.lane.b32.xlu0 %v761, 8
    %v767 = vpop.permute.xlu0 %766
    %770 = vrot.lane.b32.xlu0 %v759, 16
    %v771 = vpop.permute.xlu0 %770
    %772 = vrot.lane.b32.xlu0 %v761, 16
    %v773 = vpop.permute.xlu0 %772
    %776 = vrot.lane.b32.xlu0 %v759, 24
    %v777 = vpop.permute.xlu0 %776
    %778 = vrot.lane.b32.xlu0 %v761, 24
    %v779 = vpop.permute.xlu0 %778
    %v782 = vsel %vm723, %v759, %v765
    %v783 = vsel %vm723, %v761, %v767
    %v784 = vsel %vm726, %v782, %v771
    %v785 = vsel %vm726, %v783, %v773
    %v786 = vsel %vm729, %v784, %v777
    %v787 = vsel %vm729, %v785, %v779
    %v788 = vmul.f32 %v735, %v786
    %v789 = vmul.f32 %v737, %v787
    %792 = vrot.lane.b32.xlu0 %v788, 32
    %v793 = vpop.permute.xlu0 %792
    %794 = vrot.lane.b32.xlu0 %v789, 32
    %v795 = vpop.permute.xlu0 %794
    %800 = vrot.lane.b32.xlu0 %v471, 64
    %v801 = vpop.permute.xlu0 %800
    %802 = vrot.lane.b32.xlu0 %v472, 64
    %v803 = vpop.permute.xlu0 %802
    %v806 = vsel %vm343, %v677, %v793
    %v807 = vsel %vm343, %v680, %v795
    %vm808 = vcmask 523264
    %v809 = vsel %vm808, %v806, %v801
    %v810 = vsel %vm808, %v807, %v803
    %vm811 = vcmask 785408
    %v812 = vsel %vm811, %v809, 0.0
    %v813 = vsel %vm811, %v810, 0.0
    %814 = vst [vmem:[#allocation11] sm:$0xff] %v812
    %815 = vst [vmem:[#allocation11 + $0x8] sm:$0xff] %v813
    // Predicated region
    $region62: #{tpu_custom_call.1} parent=1 // pred_check
      _
    $region63: #{tpu_custom_call.1} parent=1 // pred_check_branch
      %817 = sbr.rel (0) target = $region65
    $region64: #{tpu_custom_call.1} parent=1 // pred_region
      %s819 = ssub.s32 256, 256
      %820 = vsyncadd [#allocation4], %s819
      %s821 = sshll.u32 [#allocation11], 4
      %s822 = int_to_ptr.vmem [resolvable:$true] %s821
      %827 = dma.vmem_to_hbm [thread:$0]  %s822, 256, %s10, [#allocation4], 128, 128, 8
    $region65: #{tpu_custom_call.1} parent=1 // pred_fallthru
      _
    // Predicated region
    $region66: #{tpu_custom_call.1} parent=1 // pred_check
      _
    $region67: #{tpu_custom_call.1} parent=1 // pred_check_branch
      %829 = sbr.rel (0) target = $region69
    $region68: #{tpu_custom_call.1} parent=1 // pred_region
      %830 = dma.done [#allocation4], 256
    $region69: #{tpu_custom_call.1} parent=1 // pred_fallthru
      _
    %831 = vsyncpa [#allocation3], 1
    %832 = vsyncpa [#allocation6], 1
    %833 = vsyncpa [#allocation9], 1
    %834 = vsyncpa [#allocation4], 1

// kernel: tpu_custom_call.1
$region0: #{tpu_custom_call.1}
  #allocation0 [shape = 'u32[]', space=smem, size = 0x4, offset = 0x4, fixed_abs, tag = 'smem constant byte address 0x4 - core index']
  #allocation1 [shape = 'u32[144,128]{1,0:T(1,128)}', space=vmem, size = 0x12000, scoped, tag = 'internal scratch']
  %s0 = inlined_call_operand.hbm [shape: bf16[16,48], index: 0, kind: input, shape index: {}]
  %s1 = inlined_call_operand.hbm [shape: bf16[16,32], index: 1, kind: input, shape index: {}]
  %s2 = inlined_call_operand.hbm [shape: bf16[48,384], index: 2, kind: input, shape index: {}]
  %s3 = inlined_call_operand.vmem [shape: f32[1,384], index: 3, kind: input, shape index: {}]
  %s4 = inlined_call_operand.hbm [shape: bf16[32,384], index: 4, kind: input, shape index: {}]
  %s5 = inlined_call_operand.vmem [shape: f32[1,384], index: 5, kind: input, shape index: {}]
  %s6 = inlined_call_operand.hbm [shape: bf16[2,32,32], index: 6, kind: input, shape index: {}]
  %s7 = inlined_call_operand.vmem [shape: f32[2,1,32], index: 7, kind: input, shape index: {}]
  %s8 = inlined_call_operand.vmem [shape: bf16[32,32], index: 8, kind: input, shape index: {}]
  %s9 = inlined_call_operand.vmem [shape: f32[1,32], index: 9, kind: input, shape index: {}]
  %s10 = inlined_call_operand.hbm [shape: f32[16,128], index: 10, kind: output, shape index: {}]
  %s11 = sld [smem:[#allocation0]]
  $region70: #{tpu_custom_call.1} parent=0
    _
  %s13 = ssub.s32 1, %s11
  %s14 = scalar_select 0, %s13, %s11
  $region1: #{tpu_custom_call.1} parent=0
    #allocation2 [shape = 'u8[4096]{0}', space=vmem, size = 0x1000, scoped, tag = 'input window, operand 0, single buffered']
    #allocation3 [shape = 's32[1]{0}', space=sflag, size = 0x4, scoped, tag = 'scoped memory for tpu_custom_call.1']
    #allocation4 [shape = 's32[1]{0}', space=sflag, size = 0x4, scoped, tag = 'scoped memory for tpu_custom_call.1']
    #allocation5 [shape = 'u8[4096]{0}', space=vmem, size = 0x1000, scoped, tag = 'input window, operand 1, single buffered']
    #allocation6 [shape = 's32[1]{0}', space=sflag, size = 0x4, scoped, tag = 'scoped memory for tpu_custom_call.1']
    #allocation7 [shape = 'u8[36864]{0}', space=vmem, size = 0x9000, scoped, tag = 'input window, operand 2, single buffered']
    #allocation8 [shape = 'u8[24576]{0}', space=vmem, size = 0x6000, scoped, tag = 'input window, operand 4, single buffered']
    #allocation9 [shape = 's32[1]{0}', space=sflag, size = 0x4, scoped, tag = 'scoped memory for tpu_custom_call.1']
    #allocation10 [shape = 'u8[16384]{0}', space=vmem, size = 0x4000, scoped, tag = 'input window, operand 6, single buffered']
    #allocation11 [shape = 'u8[8192]{0}', space=vmem, size = 0x2000, scoped, tag = 'output window, operand 0, single buffered']
    %15 = vsyncpa [#allocation3], 0
    %16 = vsyncpa [#allocation6], 0
    %17 = vsyncpa [#allocation9], 0
    %18 = vsyncpa [#allocation4], 0
    // Predicated region
    $region2: #{tpu_custom_call.1} parent=1 // pred_check
      _
    $region3: #{tpu_custom_call.1} parent=1 // pred_check_branch
      %20 = sbr.rel (0) target = $region5
    $region4: #{tpu_custom_call.1} parent=1 // pred_region
      %s22 = ssub.s32 128, 128
      %23 = vsyncadd [#allocation3], %s22
      %s24 = sshll.u32 [#allocation2], 4
      %s25 = int_to_ptr.vmem [resolvable:$true] %s24
      %30 = dma.hbm_to_vmem [thread:$0]  %s0, 128, %s25, [#allocation3], 64, 64, 4
    $region5: #{tpu_custom_call.1} parent=1 // pred_fallthru
      _
    // Predicated region
    $region6: #{tpu_custom_call.1} parent=1 // pred_check
      _
    $region7: #{tpu_custom_call.1} parent=1 // pred_check_branch
      %32 = sbr.rel (0) target = $region9
    $region8: #{tpu_custom_call.1} parent=1 // pred_region
      %s34 = ssub.s32 128, 128
      %35 = vsyncadd [#allocation6], %s34
      %s36 = sshll.u32 [#allocation5], 4
      %s37 = int_to_ptr.vmem [resolvable:$true] %s36
      %42 = dma.hbm_to_vmem [thread:$0]  %s1, 128, %s37, [#allocation6], 64, 64, 4
    $region9: #{tpu_custom_call.1} parent=1 // pred_fallthru
      _
    // Predicated region
    $region10: #{tpu_custom_call.1} parent=1 // pred_check
      _
    $region11: #{tpu_custom_call.1} parent=1 // pred_check_branch
      %44 = sbr.rel (0) target = $region13
    $region12: #{tpu_custom_call.1} parent=1 // pred_region
      %s46 = ssub.s32 1152, 1152
      %47 = vsyncadd [#allocation6], %s46
      %s48 = sshll.u32 [#allocation7], 4
      %s49 = int_to_ptr.vmem [resolvable:$true] %s48
      %54 = dma.hbm_to_vmem [thread:$0]  %s2, 1152, %s49, [#allocation6], 192, 192, 12
    $region13: #{tpu_custom_call.1} parent=1 // pred_fallthru
      _
    // Predicated region
    $region14: #{tpu_custom_call.1} parent=1 // pred_check
      _
    $region15: #{tpu_custom_call.1} parent=1 // pred_check_branch
      %56 = sbr.rel (0) target = $region17
    $region16: #{tpu_custom_call.1} parent=1 // pred_region
      _
    $region17: #{tpu_custom_call.1} parent=1 // pred_fallthru
      _
    // Predicated region
    $region18: #{tpu_custom_call.1} parent=1 // pred_check
      _
    $region19: #{tpu_custom_call.1} parent=1 // pred_check_branch
      %58 = sbr.rel (0) target = $region21
    $region20: #{tpu_custom_call.1} parent=1 // pred_region
      %s60 = ssub.s32 768, 768
      %61 = vsyncadd [#allocation9], %s60
      %s62 = sshll.u32 [#allocation8], 4
      %s63 = int_to_ptr.vmem [resolvable:$true] %s62
      %68 = dma.hbm_to_vmem [thread:$0]  %s4, 768, %s63, [#allocation9], 192, 192, 12
    $region21: #{tpu_custom_call.1} parent=1 // pred_fallthru
      _
    // Predicated region
    $region22: #{tpu_custom_call.1} parent=1 // pred_check
      _
    $region23: #{tpu_custom_call.1} parent=1 // pred_check_branch
      %70 = sbr.rel (0) target = $region25
    $region24: #{tpu_custom_call.1} parent=1 // pred_region
      _
    $region25: #{tpu_custom_call.1} parent=1 // pred_fallthru
      _
    // Predicated region
    $region26: #{tpu_custom_call.1} parent=1 // pred_check
      _
    $region27: #{tpu_custom_call.1} parent=1 // pred_check_branch
      %72 = sbr.rel (0) target = $region29
    $region28: #{tpu_custom_call.1} parent=1 // pred_region
      %s74 = ssub.s32 512, 512
      %75 = vsyncadd [#allocation9], %s74
      %s76 = sshll.u32 [#allocation10], 4
      %s77 = int_to_ptr.vmem [resolvable:$true] %s76
      %82 = dma.hbm_to_vmem [thread:$0]  %s6, 512, %s77, [#allocation9], 64, 64, 4
    $region29: #{tpu_custom_call.1} parent=1 // pred_fallthru
      _
    // Predicated region
    $region30: #{tpu_custom_call.1} parent=1 // pred_check
      _
    $region31: #{tpu_custom_call.1} parent=1 // pred_check_branch
      %84 = sbr.rel (0) target = $region33
    $region32: #{tpu_custom_call.1} parent=1 // pred_region
      _
    $region33: #{tpu_custom_call.1} parent=1 // pred_fallthru
      _
    // Predicated region
    $region34: #{tpu_custom_call.1} parent=1 // pred_check
      _
    $region35: #{tpu_custom_call.1} parent=1 // pred_check_branch
      %86 = sbr.rel (0) target = $region37
    $region36: #{tpu_custom_call.1} parent=1 // pred_region
      _
    $region37: #{tpu_custom_call.1} parent=1 // pred_fallthru
      _
    // Predicated region
    $region38: #{tpu_custom_call.1} parent=1 // pred_check
      _
    $region39: #{tpu_custom_call.1} parent=1 // pred_check_branch
      %88 = sbr.rel (0) target = $region41
    $region40: #{tpu_custom_call.1} parent=1 // pred_region
      _
    $region41: #{tpu_custom_call.1} parent=1 // pred_fallthru
      _
    // Predicated region
    $region42: #{tpu_custom_call.1} parent=1 // pred_check
      _
    $region43: #{tpu_custom_call.1} parent=1 // pred_check_branch
      %90 = sbr.rel (0) target = $region45
    $region44: #{tpu_custom_call.1} parent=1 // pred_region
      %91 = dma.done [#allocation3], 128
    $region45: #{tpu_custom_call.1} parent=1 // pred_fallthru
      _
    // Predicated region
    $region46: #{tpu_custom_call.1} parent=1 // pred_check
      _
    $region47: #{tpu_custom_call.1} parent=1 // pred_check_branch
      %93 = sbr.rel (0) target = $region49
    $region48: #{tpu_custom_call.1} parent=1 // pred_region
      %94 = dma.done [#allocation6], 128
    $region49: #{tpu_custom_call.1} parent=1 // pred_fallthru
      _
    // Predicated region
    $region50: #{tpu_custom_call.1} parent=1 // pred_check
      _
    $region51: #{tpu_custom_call.1} parent=1 // pred_check_branch
      %96 = sbr.rel (0) target = $region53
    $region52: #{tpu_custom_call.1} parent=1 // pred_region
      %97 = dma.done [#allocation6], 1152
    $region53: #{tpu_custom_call.1} parent=1 // pred_fallthru
      _
    // Predicated region
    $region54: #{tpu_custom_call.1} parent=1 // pred_check
      _
    $region55: #{tpu_custom_call.1} parent=1 // pred_check_branch
      %99 = sbr.rel (0) target = $region57
    $region56: #{tpu_custom_call.1} parent=1 // pred_region
      %100 = dma.done [#allocation9], 768
    $region57: #{tpu_custom_call.1} parent=1 // pred_fallthru
      _
    // Predicated region
    $region58: #{tpu_custom_call.1} parent=1 // pred_check
      _
    $region59: #{tpu_custom_call.1} parent=1 // pred_check_branch
      %102 = sbr.rel (0) target = $region61
    $region60: #{tpu_custom_call.1} parent=1 // pred_region
      %103 = dma.done [#allocation9], 512
    $region61: #{tpu_custom_call.1} parent=1 // pred_fallthru
      _
    %v105 = vld [vmem:[#allocation2] sm:$0xf]
    %v106 = vld [vmem:[#allocation2 + $0x4] sm:$0xf]
    %v107 = vld [vmem:[#allocation5] sm:$0xf]
    %v108 = vld [vmem:[#allocation5 + $0x4] sm:$0xf]
    %v109 = vunpack.c.l.bf16 %v107
    %v110 = vunpack.c.l.bf16 %v108
    %v111 = vld [vmem:[#allocation7] sm:$0xff]
    %v112 = vld [vmem:[#allocation7 + $0x8] sm:$0xf]
    %v113 = vld [vmem:[#allocation7 + $0xc] sm:$0xff]
    %v114 = vld [vmem:[#allocation7 + $0x14] sm:$0xf]
    %v115 = vld [vmem:[#allocation7 + $0x18] sm:$0xff]
    %v116 = vld [vmem:[#allocation7 + $0x20] sm:$0xf]
    %v117 = vld [vmem:[#allocation7 + $0x24] sm:$0xff]
    %v118 = vld [vmem:[#allocation7 + $0x2c] sm:$0xf]
    %v119 = vld [vmem:[#allocation7 + $0x30] sm:$0xff]
    %v120 = vld [vmem:[#allocation7 + $0x38] sm:$0xf]
    %v121 = vld [vmem:[#allocation7 + $0x3c] sm:$0xff]
    %v122 = vld [vmem:[#allocation7 + $0x44] sm:$0xf]
    %v123 = vld [vmem:[%s3] sm:$0x7]
    %v125 = vlaneseq
    %v126 = vshrl.u32 %v125, 7
    %v127 = vsub.s32 0, %v126
    %v128 = vrot.slane %v123, %v127
    %v129 = vlaneseq
    %v130 = vshrl.u32 %v129, 7
    %v131 = vsub.s32 1, %v130
    %v132 = vrot.slane %v123, %v131
    %v133 = vlaneseq
    %v134 = vshrl.u32 %v133, 7
    %v135 = vsub.s32 2, %v134
    %v136 = vrot.slane %v123, %v135
    %v142 = vunpack.c.l.b16 %v105
    %v143 = vunpack.c.l.b16 %v106
    %v144 = vpack.c.b16 %v143, %v142
    %v157 = vunpack.c.l.b16 %v111
    %v158 = vunpack.c.h.b16 %v111
    %v159 = vunpack.c.l.b16 %v112
    %v160 = vunpack.c.l.b16 %v113
    %v161 = vunpack.c.h.b16 %v113
    %v162 = vunpack.c.l.b16 %v114
    %v163 = vunpack.c.l.b16 %v115
    %v164 = vunpack.c.h.b16 %v115
    %v165 = vunpack.c.l.b16 %v116
    %v166 = vunpack.c.l.b16 %v117
    %v167 = vunpack.c.h.b16 %v117
    %v168 = vunpack.c.l.b16 %v118
    %v169 = vunpack.c.l.b16 %v119
    %v170 = vunpack.c.h.b16 %v119
    %v171 = vunpack.c.l.b16 %v120
    %v172 = vunpack.c.l.b16 %v121
    %v173 = vunpack.c.h.b16 %v121
    %v174 = vunpack.c.l.b16 %v122
    %v175 = vpack.c.b16 %v160, %v157
    %v176 = vpack.c.b16 %v161, %v158
    %v177 = vpack.c.b16 %v162, %v159
    %v178 = vpack.c.b16 %v166, %v163
    %v179 = vpack.c.b16 %v167, %v164
    %v180 = vpack.c.b16 %v168, %v165
    %v181 = vpack.c.b16 %v172, %v169
    %v182 = vpack.c.b16 %v173, %v170
    %v183 = vpack.c.b16 %v174, %v171
    %vm193 = vcmask 392192
    %v195 = vsel %vm193, %v144, 0
    %197 = vmatprep.subr.bf16.mxu0 %v176
    %198 = vmatpush1.bf16.msra.mxu0 %v175
    %199 = vmatprep.subr.bf16.mxu0 %v179
    %200 = vmatpush1.bf16.msra.mxu0 %v178
    %201 = vmatprep.subr.bf16.mxu0 %v182
    %202 = vmatpush1.bf16.msra.mxu0 %v181
    %203 = vmatprep.subr.bf16.mxu0 0
    %204 = vmatpush1.bf16.msra.mxu0 0
    %205 = vmatprep.subr.bf16.mxu0 0
    %206 = vmatpush1.bf16.msra.mxu0 0
    %207 = vmatprep.subr.bf16.mxu0 0
    %208 = vmatpush1.bf16.msra.mxu0 0
    %209 = vmatprep.subr.bf16.mxu0 0
    %210 = vmatpush1.bf16.msra.mxu0 0
    %211 = vmatprep.subr.bf16.mxu0 0
    %212 = vmatpush1.bf16.msra.mxu0 0
    %213 = vmatprep.subr.bf16.mxu0 0
    %214 = vmatpush1.bf16.msra.mxu0 0
    %215 = vmatprep.subr.bf16.mxu0 0
    %216 = vmatpush1.bf16.msra.mxu0 0
    %217 = vmatprep.subr.bf16.mxu0 0
    %218 = vmatpush1.bf16.msra.mxu0 0
    %219 = vmatprep.subr.bf16.mxu0 0
    %220 = vmatpush1.bf16.msra.mxu0 0
    %221 = vmatprep.subr.bf16.mxu0 0
    %222 = vmatpush1.bf16.msra.mxu0 0
    %223 = vmatprep.subr.bf16.mxu0 0
    %224 = vmatpush1.bf16.msra.mxu0 0
    %225 = vmatprep.subr.bf16.mxu0 0
    %226 = vmatpush1.bf16.msra.mxu0 0
    %227 = vmatprep.subr.bf16.mxu0 0
    %228 = vmatpush1.bf16.msra.mxu0 0
    %229 = vmatprep.mubr.bf16.mxu0 0
    %230 = vmatmul.mubr.bf16.gmra.mrb[0].mxu0 %v195
    %v231 = vpop.f32.mrb[0].mxu0
    %v232 = vadd.f32 %v128, %v231
    %v233 = vpop.f32.mrb[0].mxu0
    %v234 = vadd.f32 %v132, %v233
    %v235 = vpop.f32.mrb[0].mxu0
    %v236 = vadd.f32 %v128, %v235
    %v237 = vpop.f32.mrb[0].mxu0
    %v238 = vadd.f32 %v132, %v237
    %239 = vdwg.mxu0
    %240 = vmatprep.subr.bf16.mxu0 0
    %241 = vmatpush1.bf16.msra.mxu0 %v177
    %242 = vmatprep.subr.bf16.mxu0 0
    %243 = vmatpush1.bf16.msra.mxu0 %v180
    %244 = vmatprep.subr.bf16.mxu0 0
    %245 = vmatpush1.bf16.msra.mxu0 %v183
    %246 = vmatprep.subr.bf16.mxu0 0
    %247 = vmatpush1.bf16.msra.mxu0 0
    %248 = vmatprep.subr.bf16.mxu0 0
    %249 = vmatpush1.bf16.msra.mxu0 0
    %250 = vmatprep.subr.bf16.mxu0 0
    %251 = vmatpush1.bf16.msra.mxu0 0
    %252 = vmatprep.subr.bf16.mxu0 0
    %253 = vmatpush1.bf16.msra.mxu0 0
    %254 = vmatprep.subr.bf16.mxu0 0
    %255 = vmatpush1.bf16.msra.mxu0 0
    %256 = vmatprep.subr.bf16.mxu0 0
    %257 = vmatpush1.bf16.msra.mxu0 0
    %258 = vmatprep.subr.bf16.mxu0 0
    %259 = vmatpush1.bf16.msra.mxu0 0
    %260 = vmatprep.subr.bf16.mxu0 0
    %261 = vmatpush1.bf16.msra.mxu0 0
    %262 = vmatprep.subr.bf16.mxu0 0
    %263 = vmatpush1.bf16.msra.mxu0 0
    %264 = vmatprep.subr.bf16.mxu0 0
    %265 = vmatpush1.bf16.msra.mxu0 0
    %266 = vmatprep.subr.bf16.mxu0 0
    %267 = vmatpush1.bf16.msra.mxu0 0
    %268 = vmatprep.subr.bf16.mxu0 0
    %269 = vmatpush1.bf16.msra.mxu0 0
    %270 = vmatprep.subr.bf16.mxu0 0
    %271 = vmatpush1.bf16.msra.mxu0 0
    %272 = vmatprep.mubr.bf16.mxu0 0
    %273 = vmatmul.mubr.bf16.gmra.mrb[0].mxu0 %v195
    %v274 = vpop.f32.mrb[0].mxu0
    %v275 = vadd.f32 %v136, %v274
    %v276 = vpop.f32.mrb[0].mxu0
    %v277 = vpop.f32.mrb[0].mxu0
    %v278 = vadd.f32 %v136, %v277
    %v279 = vpop.f32.mrb[0].mxu0
    %280 = vdwg.mxu0
    %v281 = vld [vmem:[#allocation8] sm:$0xff]
    %v282 = vld [vmem:[#allocation8 + $0x8] sm:$0xf]
    %v283 = vld [vmem:[#allocation8 + $0xc] sm:$0xff]
    %v284 = vld [vmem:[#allocation8 + $0x14] sm:$0xf]
    %v285 = vld [vmem:[#allocation8 + $0x18] sm:$0xff]
    %v286 = vld [vmem:[#allocation8 + $0x20] sm:$0xf]
    %v287 = vld [vmem:[#allocation8 + $0x24] sm:$0xff]
    %v288 = vld [vmem:[#allocation8 + $0x2c] sm:$0xf]
    %v289 = vld [vmem:[%s5] sm:$0x7]
    %v291 = vlaneseq
    %v292 = vshrl.u32 %v291, 7
    %v293 = vsub.s32 0, %v292
    %v294 = vrot.slane %v289, %v293
    %v295 = vlaneseq
    %v296 = vshrl.u32 %v295, 7
    %v297 = vsub.s32 1, %v296
    %v298 = vrot.slane %v289, %v297
    %v299 = vlaneseq
    %v300 = vshrl.u32 %v299, 7
    %v301 = vsub.s32 2, %v300
    %v302 = vrot.slane %v289, %v301
    %v308 = vunpack.c.l.b16 %v107
    %v309 = vunpack.c.l.b16 %v108
    %v310 = vpack.c.b16 %v309, %v308
    %v319 = vunpack.c.l.b16 %v281
    %v320 = vunpack.c.h.b16 %v281
    %v321 = vunpack.c.l.b16 %v282
    %v322 = vunpack.c.l.b16 %v283
    %v323 = vunpack.c.h.b16 %v283
    %v324 = vunpack.c.l.b16 %v284
    %v325 = vunpack.c.l.b16 %v285
    %v326 = vunpack.c.h.b16 %v285
    %v327 = vunpack.c.l.b16 %v286
    %v328 = vunpack.c.l.b16 %v287
    %v329 = vunpack.c.h.b16 %v287
    %v330 = vunpack.c.l.b16 %v288
    %v331 = vpack.c.b16 %v322, %v319
    %v332 = vpack.c.b16 %v323, %v320
    %v333 = vpack.c.b16 %v324, %v321
    %v334 = vpack.c.b16 %v328, %v325
    %v335 = vpack.c.b16 %v329, %v326
    %v336 = vpack.c.b16 %v330, %v327
    %vm343 = vcmask 261120
    %v345 = vsel %vm343, %v310, 0
    %347 = vmatprep.subr.bf16.mxu0 %v332
    %348 = vmatpush1.bf16.msra.mxu0 %v331
    %349 = vmatprep.subr.bf16.mxu0 %v335
    %350 = vmatpush1.bf16.msra.mxu0 %v334
    %351 = vmatprep.subr.bf16.mxu0 0
    %352 = vmatpush1.bf16.msra.mxu0 0
    %353 = vmatprep.subr.bf16.mxu0 0
    %354 = vmatpush1.bf16.msra.mxu0 0
    %355 = vmatprep.subr.bf16.mxu0 0
    %356 = vmatpush1.bf16.msra.mxu0 0
    %357 = vmatprep.subr.bf16.mxu0 0
    %358 = vmatpush1.bf16.msra.mxu0 0
    %359 = vmatprep.subr.bf16.mxu0 0
    %360 = vmatpush1.bf16.msra.mxu0 0
    %361 = vmatprep.subr.bf16.mxu0 0
    %362 = vmatpush1.bf16.msra.mxu0 0
    %363 = vmatprep.subr.bf16.mxu0 0
    %364 = vmatpush1.bf16.msra.mxu0 0
    %365 = vmatprep.subr.bf16.mxu0 0
    %366 = vmatpush1.bf16.msra.mxu0 0
    %367 = vmatprep.subr.bf16.mxu0 0
    %368 = vmatpush1.bf16.msra.mxu0 0
    %369 = vmatprep.subr.bf16.mxu0 0
    %370 = vmatpush1.bf16.msra.mxu0 0
    %371 = vmatprep.subr.bf16.mxu0 0
    %372 = vmatpush1.bf16.msra.mxu0 0
    %373 = vmatprep.subr.bf16.mxu0 0
    %374 = vmatpush1.bf16.msra.mxu0 0
    %375 = vmatprep.subr.bf16.mxu0 0
    %376 = vmatpush1.bf16.msra.mxu0 0
    %377 = vmatprep.subr.bf16.mxu0 0
    %378 = vmatpush1.bf16.msra.mxu0 0
    %379 = vmatprep.mubr.bf16.mxu0 0
    %380 = vmatmul.mubr.bf16.gmra.mrb[0].mxu0 %v345
    %v381 = vpop.f32.mrb[0].mxu0
    %v382 = vadd.f32 %v294, %v381
    %v383 = vpop.f32.mrb[0].mxu0
    %v384 = vadd.f32 %v298, %v383
    %v385 = vpop.f32.mrb[0].mxu0
    %v386 = vadd.f32 %v294, %v385
    %v387 = vpop.f32.mrb[0].mxu0
    %v388 = vadd.f32 %v298, %v387
    %389 = vdwg.mxu0
    %390 = vmatprep.subr.bf16.mxu0 0
    %391 = vmatpush1.bf16.msra.mxu0 %v333
    %392 = vmatprep.subr.bf16.mxu0 0
    %393 = vmatpush1.bf16.msra.mxu0 %v336
    %394 = vmatprep.subr.bf16.mxu0 0
    %395 = vmatpush1.bf16.msra.mxu0 0
    %396 = vmatprep.subr.bf16.mxu0 0
    %397 = vmatpush1.bf16.msra.mxu0 0
    %398 = vmatprep.subr.bf16.mxu0 0
    %399 = vmatpush1.bf16.msra.mxu0 0
    %400 = vmatprep.subr.bf16.mxu0 0
    %401 = vmatpush1.bf16.msra.mxu0 0
    %402 = vmatprep.subr.bf16.mxu0 0
    %403 = vmatpush1.bf16.msra.mxu0 0
    %404 = vmatprep.subr.bf16.mxu0 0
    %405 = vmatpush1.bf16.msra.mxu0 0
    %406 = vmatprep.subr.bf16.mxu0 0
    %407 = vmatpush1.bf16.msra.mxu0 0
    %408 = vmatprep.subr.bf16.mxu0 0
    %409 = vmatpush1.bf16.msra.mxu0 0
    %410 = vmatprep.subr.bf16.mxu0 0
    %411 = vmatpush1.bf16.msra.mxu0 0
    %412 = vmatprep.subr.bf16.mxu0 0
    %413 = vmatpush1.bf16.msra.mxu0 0
    %414 = vmatprep.subr.bf16.mxu0 0
    %415 = vmatpush1.bf16.msra.mxu0 0
    %416 = vmatprep.subr.bf16.mxu0 0
    %417 = vmatpush1.bf16.msra.mxu0 0
    %418 = vmatprep.subr.bf16.mxu0 0
    %419 = vmatpush1.bf16.msra.mxu0 0
    %420 = vmatprep.subr.bf16.mxu0 0
    %421 = vmatpush1.bf16.msra.mxu0 0
    %422 = vmatprep.mubr.bf16.mxu0 0
    %423 = vmatmul.mubr.bf16.gmra.mrb[0].mxu0 %v345
    %v424 = vpop.f32.mrb[0].mxu0
    %v425 = vadd.f32 %v302, %v424
    %v426 = vpop.f32.mrb[0].mxu0
    %v427 = vpop.f32.mrb[0].mxu0
    %v428 = vadd.f32 %v302, %v427
    %v429 = vpop.f32.mrb[0].mxu0
    %430 = vdwg.mxu0
    %v431 = vadd.f32 %v232, %v382
    %v432 = vadd.f32 %v236, %v386
    %v433 = vxor.u32 %v431, 2147483648
    %v434 = vxor.u32 %v432, 2147483648
    %v435 = vmul.f32 %v433, 1.442695
    %v436 = vpow.pop %v435
    %v437 = vmul.f32 %v434, 1.442695
    %v438 = vpow.pop %v437
    %v439 = vadd.f32 %v436, 1.0
    %v440 = vadd.f32 %v438, 1.0
    %v441 = vrcp.pop %v439
    %v442 = vmul.f32 1.0, %v441
    %v443 = vrcp.pop %v440
    %v444 = vmul.f32 1.0, %v443
    %v445 = vadd.f32 %v234, %v384
    %v446 = vadd.f32 %v238, %v388
    %v447 = vxor.u32 %v445, 2147483648
    %v448 = vxor.u32 %v446, 2147483648
    %v449 = vmul.f32 %v447, 1.442695
    %v450 = vpow.pop %v449
    %v451 = vmul.f32 %v448, 1.442695
    %v452 = vpow.pop %v451
    %v453 = vadd.f32 %v450, 1.0
    %v454 = vadd.f32 %v452, 1.0
    %v455 = vrcp.pop %v453
    %v456 = vmul.f32 1.0, %v455
    %v457 = vrcp.pop %v454
    %v458 = vmul.f32 1.0, %v457
    %v459 = vmul.f32 %v442, %v425
    %v460 = vmul.f32 %v444, %v428
    %v461 = vadd.f32 %v275, %v459
    %v462 = vadd.f32 %v278, %v460
    %v463 = vtanh.pop %v461
    %v464 = vtanh.pop %v462
    %v465 = vsub.f32 1.0, %v456
    %v466 = vsub.f32 1.0, %v458
    %v467 = vmul.f32 %v465, %v463
    %v468 = vmul.f32 %v466, %v464
    %v469 = vmul.f32 %v456, %v109
    %v470 = vmul.f32 %v458, %v110
    %v471 = vadd.f32 %v467, %v469
    %v472 = vadd.f32 %v468, %v470
    %v473 = vpack.c.bf16 %v472, %v471
    %v474 = vld [vmem:[#allocation10] sm:$0xf]
    %v475 = vld [vmem:[#allocation10 + $0x4] sm:$0xf]
    %v476 = vld [vmem:[#allocation10 + $0x8] sm:$0xf]
    %v477 = vld [vmem:[#allocation10 + $0xc] sm:$0xf]
    %v478 = vld [vmem:[%s7] sm:$0x1]
    %v480 = vlaneseq
    %v481 = vshrl.u32 %v480, 7
    %v482 = vsub.s32 0, %v481
    %v483 = vrot.slane %v478, %v482
    %v489 = vunpack.c.l.b16 %v474
    %v490 = vunpack.c.l.b16 %v475
    %v491 = vunpack.c.l.b16 %v476
    %v492 = vunpack.c.l.b16 %v477
    %v493 = vpack.c.b16 %v490, %v489
    %v494 = vpack.c.b16 %v492, %v491
    %v498 = vsel %vm343, %v473, 0
    %500 = vmatprep.subr.bf16.mxu0 0
    %501 = vmatpush1.bf16.msra.mxu0 %v493
    %502 = vmatprep.subr.bf16.mxu0 0
    %503 = vmatpush1.bf16.msra.mxu0 %v494
    %504 = vmatprep.subr.bf16.mxu0 0
    %505 = vmatpush1.bf16.msra.mxu0 0
    %506 = vmatprep.subr.bf16.mxu0 0
    %507 = vmatpush1.bf16.msra.mxu0 0
    %508 = vmatprep.subr.bf16.mxu0 0
    %509 = vmatpush1.bf16.msra.mxu0 0
    %510 = vmatprep.subr.bf16.mxu0 0
    %511 = vmatpush1.bf16.msra.mxu0 0
    %512 = vmatprep.subr.bf16.mxu0 0
    %513 = vmatpush1.bf16.msra.mxu0 0
    %514 = vmatprep.subr.bf16.mxu0 0
    %515 = vmatpush1.bf16.msra.mxu0 0
    %516 = vmatprep.subr.bf16.mxu0 0
    %517 = vmatpush1.bf16.msra.mxu0 0
    %518 = vmatprep.subr.bf16.mxu0 0
    %519 = vmatpush1.bf16.msra.mxu0 0
    %520 = vmatprep.subr.bf16.mxu0 0
    %521 = vmatpush1.bf16.msra.mxu0 0
    %522 = vmatprep.subr.bf16.mxu0 0
    %523 = vmatpush1.bf16.msra.mxu0 0
    %524 = vmatprep.subr.bf16.mxu0 0
    %525 = vmatpush1.bf16.msra.mxu0 0
    %526 = vmatprep.subr.bf16.mxu0 0
    %527 = vmatpush1.bf16.msra.mxu0 0
    %528 = vmatprep.subr.bf16.mxu0 0
    %529 = vmatpush1.bf16.msra.mxu0 0
    %530 = vmatprep.subr.bf16.mxu0 0
    %531 = vmatpush1.bf16.msra.mxu0 0
    %532 = vmatprep.mubr.bf16.mxu0 0
    %533 = vmatmul.mubr.bf16.gmra.mrb[0].mxu0 %v498
    %v534 = vpop.f32.mrb[0].mxu0
    %v535 = vadd.f32 %v483, %v534
    %v536 = vpop.f32.mrb[0].mxu0
    %v537 = vpop.f32.mrb[0].mxu0
    %v538 = vadd.f32 %v483, %v537
    %v539 = vpop.f32.mrb[0].mxu0
    %540 = vdwg.mxu0
    %v541 = vmax.f32 %v535, 0.0
    %v542 = vmax.f32 %v538, 0.0
    %v543 = vpack.c.bf16 %v542, %v541
    %s544 = scalar_lea.vmem [#allocation10], 16
    %v545 = vld [vmem:[%s544] sm:$0xf]
    %v546 = vld [vmem:[%s544 + $0x4] sm:$0xf]
    %v547 = vld [vmem:[%s544 + $0x8] sm:$0xf]
    %v548 = vld [vmem:[%s544 + $0xc] sm:$0xf]
    %s549 = scalar_lea.vmem %s7, 1
    %v550 = vld [vmem:[%s549] sm:$0x1]
    %v552 = vlaneseq
    %v553 = vshrl.u32 %v552, 7
    %v554 = vsub.s32 0, %v553
    %v555 = vrot.slane %v550, %v554
    %v561 = vunpack.c.l.b16 %v545
    %v562 = vunpack.c.l.b16 %v546
    %v563 = vunpack.c.l.b16 %v547
    %v564 = vunpack.c.l.b16 %v548
    %v565 = vpack.c.b16 %v562, %v561
    %v566 = vpack.c.b16 %v564, %v563
    %v570 = vsel %vm343, %v543, 0
    %572 = vmatprep.subr.bf16.mxu0 0
    %573 = vmatpush1.bf16.msra.mxu0 %v565
    %574 = vmatprep.subr.bf16.mxu0 0
    %575 = vmatpush1.bf16.msra.mxu0 %v566
    %576 = vmatprep.subr.bf16.mxu0 0
    %577 = vmatpush1.bf16.msra.mxu0 0
    %578 = vmatprep.subr.bf16.mxu0 0
    %579 = vmatpush1.bf16.msra.mxu0 0
    %580 = vmatprep.subr.bf16.mxu0 0
    %581 = vmatpush1.bf16.msra.mxu0 0
    %582 = vmatprep.subr.bf16.mxu0 0
    %583 = vmatpush1.bf16.msra.mxu0 0
    %584 = vmatprep.subr.bf16.mxu0 0
    %585 = vmatpush1.bf16.msra.mxu0 0
    %586 = vmatprep.subr.bf16.mxu0 0
    %587 = vmatpush1.bf16.msra.mxu0 0
    %588 = vmatprep.subr.bf16.mxu0 0
    %589 = vmatpush1.bf16.msra.mxu0 0
    %590 = vmatprep.subr.bf16.mxu0 0
    %591 = vmatpush1.bf16.msra.mxu0 0
    %592 = vmatprep.subr.bf16.mxu0 0
    %593 = vmatpush1.bf16.msra.mxu0 0
    %594 = vmatprep.subr.bf16.mxu0 0
    %595 = vmatpush1.bf16.msra.mxu0 0
    %596 = vmatprep.subr.bf16.mxu0 0
    %597 = vmatpush1.bf16.msra.mxu0 0
    %598 = vmatprep.subr.bf16.mxu0 0
    %599 = vmatpush1.bf16.msra.mxu0 0
    %600 = vmatprep.subr.bf16.mxu0 0
    %601 = vmatpush1.bf16.msra.mxu0 0
    %602 = vmatprep.subr.bf16.mxu0 0
    %603 = vmatpush1.bf16.msra.mxu0 0
    %604 = vmatprep.mubr.bf16.mxu0 0
    %605 = vmatmul.mubr.bf16.gmra.mrb[0].mxu0 %v570
    %v606 = vpop.f32.mrb[0].mxu0
    %v607 = vadd.f32 %v555, %v606
    %v608 = vpop.f32.mrb[0].mxu0
    %v609 = vpop.f32.mrb[0].mxu0
    %v610 = vadd.f32 %v555, %v609
    %v611 = vpop.f32.mrb[0].mxu0
    %612 = vdwg.mxu0
    %v613 = vmax.f32 %v607, 0.0
    %v614 = vmax.f32 %v610, 0.0
    %v615 = vpack.c.bf16 %v614, %v613
    %v616 = vld [vmem:[%s8] sm:$0xf]
    %v617 = vld [vmem:[%s8 + $0x4] sm:$0xf]
    %v618 = vld [vmem:[%s8 + $0x8] sm:$0xf]
    %v619 = vld [vmem:[%s8 + $0xc] sm:$0xf]
    %v620 = vld [vmem:[%s9] sm:$0x1]
    %v622 = vlaneseq
    %v623 = vshrl.u32 %v622, 7
    %v624 = vsub.s32 0, %v623
    %v625 = vrot.slane %v620, %v624
    %v631 = vunpack.c.l.b16 %v616
    %v632 = vunpack.c.l.b16 %v617
    %v633 = vunpack.c.l.b16 %v618
    %v634 = vunpack.c.l.b16 %v619
    %v635 = vpack.c.b16 %v632, %v631
    %v636 = vpack.c.b16 %v634, %v633
    %v640 = vsel %vm343, %v615, 0
    %642 = vmatprep.subr.bf16.mxu0 0
    %643 = vmatpush1.bf16.msra.mxu0 %v635
    %644 = vmatprep.subr.bf16.mxu0 0
    %645 = vmatpush1.bf16.msra.mxu0 %v636
    %646 = vmatprep.subr.bf16.mxu0 0
    %647 = vmatpush1.bf16.msra.mxu0 0
    %648 = vmatprep.subr.bf16.mxu0 0
    %649 = vmatpush1.bf16.msra.mxu0 0
    %650 = vmatprep.subr.bf16.mxu0 0
    %651 = vmatpush1.bf16.msra.mxu0 0
    %652 = vmatprep.subr.bf16.mxu0 0
    %653 = vmatpush1.bf16.msra.mxu0 0
    %654 = vmatprep.subr.bf16.mxu0 0
    %655 = vmatpush1.bf16.msra.mxu0 0
    %656 = vmatprep.subr.bf16.mxu0 0
    %657 = vmatpush1.bf16.msra.mxu0 0
    %658 = vmatprep.subr.bf16.mxu0 0
    %659 = vmatpush1.bf16.msra.mxu0 0
    %660 = vmatprep.subr.bf16.mxu0 0
    %661 = vmatpush1.bf16.msra.mxu0 0
    %662 = vmatprep.subr.bf16.mxu0 0
    %663 = vmatpush1.bf16.msra.mxu0 0
    %664 = vmatprep.subr.bf16.mxu0 0
    %665 = vmatpush1.bf16.msra.mxu0 0
    %666 = vmatprep.subr.bf16.mxu0 0
    %667 = vmatpush1.bf16.msra.mxu0 0
    %668 = vmatprep.subr.bf16.mxu0 0
    %669 = vmatpush1.bf16.msra.mxu0 0
    %670 = vmatprep.subr.bf16.mxu0 0
    %671 = vmatpush1.bf16.msra.mxu0 0
    %672 = vmatprep.subr.bf16.mxu0 0
    %673 = vmatpush1.bf16.msra.mxu0 0
    %674 = vmatprep.mubr.bf16.mxu0 0
    %675 = vmatmul.mubr.bf16.gmra.mrb[0].mxu0 %v640
    %v676 = vpop.f32.mrb[0].mxu0
    %v677 = vadd.f32 %v625, %v676
    %v678 = vpop.f32.mrb[0].mxu0
    %v679 = vpop.f32.mrb[0].mxu0
    %v680 = vadd.f32 %v625, %v679
    %v681 = vpop.f32.mrb[0].mxu0
    %682 = vdwg.mxu0
    %685 = vrot.lane.b32.xlu0 %v677, 120
    %v686 = vpop.permute.xlu0 %685
    %687 = vrot.lane.b32.xlu0 %v680, 120
    %v688 = vpop.permute.xlu0 %687
    %v691 = vmax.f32 %v677, %v686
    %v692 = vmax.f32 %v680, %v688
    %695 = vrot.lane.b32.xlu0 %v691, 112
    %v696 = vpop.permute.xlu0 %695
    %697 = vrot.lane.b32.xlu0 %v692, 112
    %v698 = vpop.permute.xlu0 %697
    %v701 = vmax.f32 %v691, %v696
    %v702 = vmax.f32 %v692, %v698
    %705 = vrot.lane.b32.xlu0 %v701, 8
    %v706 = vpop.permute.xlu0 %705
    %707 = vrot.lane.b32.xlu0 %v702, 8
    %v708 = vpop.permute.xlu0 %707
    %711 = vrot.lane.b32.xlu0 %v701, 16
    %v712 = vpop.permute.xlu0 %711
    %713 = vrot.lane.b32.xlu0 %v702, 16
    %v714 = vpop.permute.xlu0 %713
    %717 = vrot.lane.b32.xlu0 %v701, 24
    %v718 = vpop.permute.xlu0 %717
    %719 = vrot.lane.b32.xlu0 %v702, 24
    %v720 = vpop.permute.xlu0 %719
    %vm723 = vcmask 64512
    %v724 = vsel %vm723, %v701, %v706
    %v725 = vsel %vm723, %v702, %v708
    %vm726 = vcmask 130048
    %v727 = vsel %vm726, %v724, %v712
    %v728 = vsel %vm726, %v725, %v714
    %vm729 = vcmask 195584
    %v730 = vsel %vm729, %v727, %v718
    %v731 = vsel %vm729, %v728, %v720
    %v732 = vsub.f32 %v677, %v730
    %v733 = vsub.f32 %v680, %v731
    %v734 = vmul.f32 %v732, 1.442695
    %v735 = vpow.pop %v734
    %v736 = vmul.f32 %v733, 1.442695
    %v737 = vpow.pop %v736
    %740 = vrot.lane.b32.xlu0 %v735, 120
    %v741 = vpop.permute.xlu0 %740
    %742 = vrot.lane.b32.xlu0 %v737, 120
    %v743 = vpop.permute.xlu0 %742
    %v746 = vadd.f32 %v735, %v741
    %v747 = vadd.f32 %v737, %v743
    %750 = vrot.lane.b32.xlu0 %v746, 112
    %v751 = vpop.permute.xlu0 %750
    %752 = vrot.lane.b32.xlu0 %v747, 112
    %v753 = vpop.permute.xlu0 %752
    %v756 = vadd.f32 %v746, %v751
    %v757 = vadd.f32 %v747, %v753
    %v758 = vrcp.pop %v756
    %v759 = vmul.f32 1.0, %v758
    %v760 = vrcp.pop %v757
    %v761 = vmul.f32 1.0, %v760
    %764 = vrot.lane.b32.xlu0 %v759, 8
    %v765 = vpop.permute.xlu0 %764
    %766 = vrot.lane.b32.xlu0 %v761, 8
    %v767 = vpop.permute.xlu0 %766
    %770 = vrot.lane.b32.xlu0 %v759, 16
    %v771 = vpop.permute.xlu0 %770
    %772 = vrot.lane.b32.xlu0 %v761, 16
    %v773 = vpop.permute.xlu0 %772
    %776 = vrot.lane.b32.xlu0 %v759, 24
    %v777 = vpop.permute.xlu0 %776
    %778 = vrot.lane.b32.xlu0 %v761, 24
    %v779 = vpop.permute.xlu0 %778
    %v782 = vsel %vm723, %v759, %v765
    %v783 = vsel %vm723, %v761, %v767
    %v784 = vsel %vm726, %v782, %v771
    %v785 = vsel %vm726, %v783, %v773
    %v786 = vsel %vm729, %v784, %v777
    %v787 = vsel %vm729, %v785, %v779
    %v788 = vmul.f32 %v735, %v786
    %v789 = vmul.f32 %v737, %v787
    %792 = vrot.lane.b32.xlu0 %v788, 32
    %v793 = vpop.permute.xlu0 %792
    %794 = vrot.lane.b32.xlu0 %v789, 32
    %v795 = vpop.permute.xlu0 %794
    %800 = vrot.lane.b32.xlu0 %v471, 64
    %v801 = vpop.permute.xlu0 %800
    %802 = vrot.lane.b32.xlu0 %v472, 64
    %v803 = vpop.permute.xlu0 %802
    %v806 = vsel %vm343, %v677, %v793
    %v807 = vsel %vm343, %v680, %v795
    %vm808 = vcmask 523264
    %v809 = vsel %vm808, %v806, %v801
    %v810 = vsel %vm808, %v807, %v803
    %vm811 = vcmask 785408
    %v812 = vsel %vm811, %v809, 0.0
    %v813 = vsel %vm811, %v810, 0.0
    %814 = vst [vmem:[#allocation11] sm:$0xff] %v812
    %815 = vst [vmem:[#allocation11 + $0x8] sm:$0xff] %v813
    // Predicated region
    $region62: #{tpu_custom_call.1} parent=1 // pred_check
      _
    $region63: #{tpu_custom_call.1} parent=1 // pred_check_branch
      %817 = sbr.rel (0) target = $region65
    $region64: #{tpu_custom_call.1} parent=1 // pred_region
      %s819 = ssub.s32 256, 256
      %820 = vsyncadd [#allocation4], %s819
      %s821 = sshll.u32 [#allocation11], 4
      %s822 = int_to_ptr.vmem [resolvable:$true] %s821
      %827 = dma.vmem_to_hbm [thread:$0]  %s822, 256, %s10, [#allocation4], 128, 128, 8
    $region65: #{tpu_custom_call.1} parent=1 // pred_fallthru
      _
    // Predicated region
    $region66: #{tpu_custom_call.1} parent=1 // pred_check
      _
    $region67: #{tpu_custom_call.1} parent=1 // pred_check_branch
      %829 = sbr.rel (0) target = $region69
    $region68: #{tpu_custom_call.1} parent=1 // pred_region
      %830 = dma.done [#allocation4], 256
    $region69: #{tpu_custom_call.1} parent=1 // pred_fallthru
      _
    %831 = vsyncpa [#allocation3], 1
    %832 = vsyncpa [#allocation6], 1
    %833 = vsyncpa [#allocation9], 1
    %834 = vsyncpa [#allocation4], 1

</llo_original>
